<compile_context>
chip_gen: v6e
topology: v6e:2x2x1
jax: 0.10.0
libtpu: 0.0.40
codegen_flags: <defaults>
</compile_context>

<pallas_src>
import functools

import jax
import jax.numpy as jnp
from jax.experimental import pallas as pl
from jax.experimental.pallas import tpu as pltpu


# ---------------------------------------------------------------------------
# Per-generation tiling knobs.
# ---------------------------------------------------------------------------
def _detect_tpu_generation():
    try:
        kind = jax.devices()[0].device_kind.lower()
    except Exception:
        return "unknown"
    for g in ("v7", "v6", "v5"):
        if g in kind:
            return g
    return "unknown"


_GEN = _detect_tpu_generation()


def _weight_tile_budget():
    """(max bytes for one bf16 weight tile, vmem_limit_bytes or None)."""
    if _GEN == "v7":
        return 12 << 20, 48 << 20      # 64 MiB physical VMEM: stay <= ~48 MiB
    if _GEN == "v6":
        return 6 << 20, None           # fits 32 MiB default scoped VMEM
    return 4 << 20, None               # v5e / unknown: 16 MiB default scoped


def _pick_tk(K, tn, budget_bytes, itemsize=2):
    """Largest tk (multiple of 128, dividing K) with tk*tn*itemsize<=budget."""
    if K * tn * itemsize <= budget_bytes:
        return K
    t = (budget_bytes // (tn * itemsize)) // 128 * 128
    while t >= 128:
        if K % t == 0:
            return t
        t -= 128
    raise ValueError(f"no valid tk for K={K}, tn={tn}")


# ---------------------------------------------------------------------------
# Fused Linear (+ folded-BN bias + optional ReLU), K-streaming.
# ---------------------------------------------------------------------------
def _linear_kernel(x_ref, w_ref, b_ref, o_ref, *scratch, apply_relu):
    # f32 outputs accumulate directly into o_ref (block index ignores k);
    # bf16 outputs use an f32 VMEM scratch accumulator.
    acc_ref = scratch[0] if scratch else o_ref
    k = pl.program_id(2)

    @pl.when(k == 0)
    def _():
        acc_ref[...] = jnp.broadcast_to(b_ref[...], acc_ref.shape).astype(
            acc_ref.dtype)

    acc_ref[...] += jnp.dot(x_ref[...], w_ref[...],
                            preferred_element_type=jnp.float32)

    if scratch or apply_relu:
        @pl.when(k == pl.num_programs(2) - 1)
        def _():
            y = acc_ref[...]
            if apply_relu:
                y = jnp.maximum(y, 0.0)
            o_ref[...] = y.astype(o_ref.dtype)


def linear_fused(x, w, b, *, apply_relu, out_dtype, tk, tn,
                 vmem_limit_bytes=None):
    """relu?(x @ w + b).  x:(M,K) bf16, w:(K,N) bf16, b:(1,N) f32."""
    M, K = x.shape
    K2, N = w.shape
    assert K == K2 and b.shape == (1, N)
    assert N % tn == 0 and K % tk == 0

    grid = (1, N // tn, K // tk)
    use_scratch = (jnp.dtype(out_dtype) != jnp.dtype(jnp.float32))
    scratch = [pltpu.VMEM((M, tn), jnp.float32)] if use_scratch else []

    cost = pl.CostEstimate(
        flops=2 * M * K * N,
        transcendentals=0,
        bytes_accessed=(M * K * x.dtype.itemsize * (N // tn)   # x re-read per j
                        + K * N * w.dtype.itemsize
                        + N * 4
                        + M * N * jnp.dtype(out_dtype).itemsize),
    )

    cp_kwargs = dict(dimension_semantics=("parallel", "parallel", "arbitrary"))
    if vmem_limit_bytes is not None:
        cp_kwargs["vmem_limit_bytes"] = vmem_limit_bytes

    return pl.pallas_call(
        functools.partial(_linear_kernel, apply_relu=apply_relu),
        out_shape=jax.ShapeDtypeStruct((M, N), out_dtype),
        grid_spec=pltpu.PrefetchScalarGridSpec(
            num_scalar_prefetch=0,
            grid=grid,
            in_specs=[
                pl.BlockSpec((M, tk), lambda i, j, k: (i, k)),   # activations
                pl.BlockSpec((tk, tn), lambda i, j, k: (k, j)),  # weight tile
                pl.BlockSpec((1, tn), lambda i, j, k: (0, j)),   # folded bias
            ],
            out_specs=pl.BlockSpec((M, tn), lambda i, j, k: (i, j)),
            scratch_shapes=scratch,
        ),
        compiler_params=pltpu.CompilerParams(**cp_kwargs),
        cost_estimate=cost,
    )(x, w, b)


# ---------------------------------------------------------------------------
# Fused stack of (hidden -> hidden) Linear+BN+ReLU layers, layer axis blocked,
# optionally with the (padded) output head folded in as the last layer.
# Activation stays resident in a bf16 VMEM scratch across the whole chain.
# ---------------------------------------------------------------------------
def _stacked_kernel(x_ref, w_ref, b_ref, o_ref, act_ref, *, lb, n_layers,
                    fold_head):
    l = pl.program_id(0)
    nsteps = pl.num_programs(0)

    @pl.when(l == 0)
    def _():
        act_ref[...] = x_ref[...].astype(act_ref.dtype)

    n_relu = n_layers - 1 if fold_head else n_layers
    j_head = (n_layers - 1) % lb        # static slot of the head in the block

    for j in range(lb):                 # statically unrolled layer block
        gl = l * lb + j                 # global layer index (traced scalar)
        y = jnp.dot(act_ref[...], w_ref[j],
                    preferred_element_type=jnp.float32) + b_ref[j]

        if fold_head and j == j_head:
            @pl.when(l == nsteps - 1)   # output head: no ReLU, f32 logits
            def _(y=y):
                o_ref[...] = y.astype(o_ref.dtype)

        @pl.when(gl < n_relu)           # hidden layers (padding layers skipped)
        def _(y=y):
            act_ref[...] = jnp.maximum(y, 0.0).astype(act_ref.dtype)

    if not fold_head:
        @pl.when(l == nsteps - 1)
        def _():
            o_ref[...] = act_ref[...].astype(o_ref.dtype)


def stacked_layers(x, w_stack, b_stack, *, lb, fold_head, out_dtype):
    M, H = x.shape
    L, H1, H2 = w_stack.shape
    assert H1 == H and H2 == H and b_stack.shape == (L, 1, H)

    lb = max(1, min(lb, L))
    L_pad = (L + lb - 1) // lb * lb
    if L_pad != L:                      # pad with dummy layers (guarded off)
        w_stack = jnp.pad(w_stack, ((0, L_pad - L), (0, 0), (0, 0)))
        b_stack = jnp.pad(b_stack, ((0, L_pad - L), (0, 0), (0, 0)))
    nsteps = L_pad // lb

    cost = pl.CostEstimate(
        flops=2 * M * H * H * L,
        transcendentals=0,
        bytes_accessed=(L_pad * H * H * w_stack.dtype.itemsize
                        + L_pad * H * 4
                        + M * H * x.dtype.itemsize
                        + M * H * jnp.dtype(out_dtype).itemsize),
    )

    return pl.pallas_call(
        functools.partial(_stacked_kernel, lb=lb, n_layers=L,
                          fold_head=fold_head),
        out_shape=jax.ShapeDtypeStruct((M, H), out_dtype),
        grid_spec=pltpu.PrefetchScalarGridSpec(
            num_scalar_prefetch=0,
            grid=(nsteps,),
            in_specs=[
                pl.BlockSpec((M, H), lambda l: (0, 0)),           # input act
                pl.BlockSpec((lb, H, H), lambda l: (l, 0, 0)),    # Lb weights
                pl.BlockSpec((lb, 1, H), lambda l: (l, 0, 0)),    # Lb biases
            ],
            out_specs=pl.BlockSpec((M, H), lambda l: (0, 0)),
            scratch_shapes=[pltpu.VMEM((M, H), jnp.bfloat16)],    # resident act
        ),
        compiler_params=pltpu.CompilerParams(
            dimension_semantics=("arbitrary",)),  # sequential layer chain
        cost_estimate=cost,
    )(x, w_stack, b_stack)


# ---------------------------------------------------------------------------
# Parameter construction (PyTorch-style init), eval-mode BN folded into (w, b).
# ---------------------------------------------------------------------------
def _linear_init(key, in_f, out_f):
    kw, kb = jax.random.split(key)
    bound = 1.0 / float(in_f) ** 0.5
    w = jax.random.uniform(kw, (in_f, out_f), jnp.float32, -bound, bound)
    b = jax.random.uniform(kb, (1, out_f), jnp.float32, -bound, bound)
    return w, b


def _bn_fold_terms(key, feat, eps=1e-5):
    kg, kb, km, kv = jax.random.split(key, 4)
    gamma = jax.random.uniform(kg, (1, feat), jnp.float32, 0.5, 1.5)
    beta = jax.random.uniform(kb, (1, feat), jnp.float32, -0.5, 0.5)
    running_mean = jax.random.uniform(km, (1, feat), jnp.float32, -0.5, 0.5)
    running_var = jax.random.uniform(kv, (1, feat), jnp.float32, 0.5, 1.5)
    scale = gamma / jnp.sqrt(running_var + eps)
    shift = beta - running_mean * scale
    return scale, shift


def _fused_layer(key, in_f, out_f):
    k1, k2 = jax.random.split(key)
    w, b = _linear_init(k1, in_f, out_f)
    scale, shift = _bn_fold_terms(k2, out_f)
    return (w * scale).astype(jnp.bfloat16), b * scale + shift


def init_params(key, in_features, hidden_initial, hidden, num_classes,
                num_intermediate):
    params = {}
    key, k = jax.random.split(key)
    params["initial"] = _fused_layer(k, in_features, hidden_initial)

    key, k = jax.random.split(key)
    params["inter_first"] = _fused_layer(k, hidden_initial, hidden)

    ws, bs = [], []
    for _ in range(num_intermediate - 1):
        key, k = jax.random.split(key)
        w, b = _fused_layer(k, hidden, hidden)
        ws.append(w)
        bs.append(b)

    # Output head (no BN/ReLU), zero-padded to a multiple of 128 lanes.
    n_pad = ((num_classes + 127) // 128) * 128
    key, k = jax.random.split(key)
    w, b = _linear_init(k, hidden, num_classes)
    w_p = jnp.zeros((hidden, n_pad), jnp.float32).at[:, :num_classes].set(w)
    b_p = jnp.zeros((1, n_pad), jnp.float32).at[:, :num_classes].set(b)
    w_p = w_p.astype(jnp.bfloat16)

    if n_pad == hidden and ws:
        # Padded head tile matches the hidden tiles -> fold it into the stack
        # (removes one dispatch + one HBM activation round-trip).
        ws.append(w_p)
        bs.append(b_p)
        params["head"] = None
    else:
        params["head"] = (w_p, b_p)

    params["stack"] = (jnp.stack(ws), jnp.stack(bs)) if ws else None
    return params


# ---------------------------------------------------------------------------
# Forward pass: 3 pallas_calls (initial, first intermediate, fused
# 46-layer-stack + head) when the head folds; 4 otherwise.
# ---------------------------------------------------------------------------
@functools.partial(jax.jit, static_argnames=("num_classes",))
def imagenet_narrow_mlp_forward(params, x_nchw, *, num_classes):
    B = x_nchw.shape[0]
    x = x_nchw.reshape(B, -1)                       # nn.Flatten (NCHW row-major)

    # Pad batch to 16: bf16 packs 16 rows per sublane group.
    B_pad = ((B + 15) // 16) * 16
    if B_pad != B:
        x = jnp.pad(x, ((0, B_pad - B), (0, 0)))
    x = x.astype(jnp.bfloat16)

    budget, vmem_limit = _weight_tile_budget()

    # --- initial layer (150528 -> 2048): pure HBM weight streaming at small B.
    w, b = params["initial"]
    K, N = w.shape
    # On v7x split N across the two TensorCores ("parallel" j axis).
    tn = N // 2 if (_GEN == "v7" and N % 256 == 0) else N
    tk = _pick_tk(K, tn, budget)
    x = linear_fused(x, w, b, apply_relu=True, out_dtype=jnp.bfloat16,
                     tk=tk, tn=tn, vmem_limit_bytes=vmem_limit)

    # --- first intermediate layer (2048 -> 1024, different input width).
    w, b = params["inter_first"]
    K, N = w.shape
    tk = _pick_tk(K, N, budget)
    x = linear_fused(x, w, b, apply_relu=True, out_dtype=jnp.bfloat16,
                     tk=tk, tn=N, vmem_limit_bytes=vmem_limit)

    # --- remaining 46 identical layers (+ padded head, if foldable), fused.
    fold_head = params["head"] is None
    if params["stack"] is not None:
        w_stack, b_stack = params["stack"]
        lb = 2 if _GEN in ("v5", "unknown") else 4   # layer-axis blocking
        x = stacked_layers(x, w_stack, b_stack, lb=lb, fold_head=fold_head,
                           out_dtype=jnp.float32 if fold_head else jnp.bfloat16)

    if not fold_head:
        w, b = params["head"]
        K, N = w.shape
        tk = _pick_tk(K, N, budget)
        x = linear_fused(x, w, b, apply_relu=False, out_dtype=jnp.float32,
                         tk=tk, tn=N)

    return x[:B, :num_classes]


# ---------------------------------------------------------------------------
# Pure-JAX reference with identical folded-BN bf16 parameters / bf16 act chain.
# ---------------------------------------------------------------------------
def ref_forward(params, x_nchw, num_classes):
    y = x_nchw.reshape(x_nchw.shape[0], -1).astype(jnp.bfloat16)

    def layer(y, w, b, relu):
        z = jnp.dot(y, w, preferred_element_type=jnp.float32) + b
        return jnp.maximum(z, 0.0) if relu else z

    y = layer(y, *params["initial"], True).astype(jnp.bfloat16)
    y = layer(y, *params["inter_first"], True).astype(jnp.bfloat16)

    fold_head = params["head"] is None
    if params["stack"] is not None:
        w_stack, b_stack = params["stack"]
        n_hidden = w_stack.shape[0] - (1 if fold_head else 0)
        for l in range(n_hidden):
            y = layer(y, w_stack[l], b_stack[l], True).astype(jnp.bfloat16)
    if fold_head:
        w_stack, b_stack = params["stack"]
        y = layer(y, w_stack[-1], b_stack[-1], False)
    else:
        y = layer(y, *params["head"], False)
    return y[:, :num_classes]


# ---------------------------------------------------------------------------
if __name__ == "__main__":
    # Scaled-down demo shapes (original: 3x224x224 -> 2048 -> 47x1024 -> 1000).
    # Layer structure is identical: initial + 47 intermediates + head; the head
    # pads to HIDDEN so the production "fold head into the stack" path runs.
    B, C, Hs, Ws = 2, 3, 16, 16
    IN_FEATURES = C * Hs * Ws          # 768
    HIDDEN_INITIAL = 256
    HIDDEN = 128
    NUM_CLASSES = 100                  # pads to 128 == HIDDEN (prod: 1000->1024)
    NUM_INTERMEDIATE = 47

    key = jax.random.PRNGKey(0)
    key, kx, kp = jax.random.split(key, 3)

    x = jax.random.normal(kx, (B, C, Hs, Ws), jnp.float32)
    params = init_params(kp, IN_FEATURES, HIDDEN_INITIAL, HIDDEN,
                         NUM_CLASSES, NUM_INTERMEDIATE)

    out = imagenet_narrow_mlp_forward(params, x, num_classes=NUM_CLASSES)
    out = jax.block_until_ready(out)

    assert out.shape == (B, NUM_CLASSES), out.shape
    assert out.dtype == jnp.float32

    ref = ref_forward(params, x, NUM_CLASSES)
    max_err = float(jnp.max(jnp.abs(out - ref)))
    assert jnp.allclose(out, ref, atol=5e-2, rtol=5e-2), max_err

    print("KERNEL_OK")
</pallas_src>

<mosaic_0001>
module attributes {stable_mosaic.version = 11 : i64} {
  func.func @_stacked_kernel(%arg0: i32, %arg1: memref<16x128xbf16, #tpu.memory_space<vmem>>, %arg2: memref<2x128x128xbf16, #tpu.memory_space<vmem>>, %arg3: memref<2x1x128xf32, #tpu.memory_space<vmem>>, %arg4: memref<16x128xf32, #tpu.memory_space<vmem>>, %arg5: memref<16x128xbf16, #tpu.memory_space<vmem>>) attributes {dimension_semantics = [#tpu.dimension_semantics<arbitrary>], iteration_bounds = array<i64: 24>, scalar_prefetch = 0 : i64, scratch_operands = 1 : i64, tpu.core_type = #tpu.core_type<tc>, window_params = [{pipeline_mode = #tpu.pipeline_mode<synchronous>, transform_indices = @transform_0, window_bounds = array<i64: 16, 128>}, {transform_indices = @transform_1, window_bounds = array<i64: 2, 128, 128>}, {transform_indices = @transform_2, window_bounds = array<i64: 2, 1, 128>}, {pipeline_mode = #tpu.pipeline_mode<synchronous>, transform_indices = @transform_3, window_bounds = array<i64: 16, 128>}]} {
    %c0_i32 = arith.constant 0 : i32
    %0 = arith.cmpi eq, %arg0, %c0_i32 : i32
    %1 = arith.extui %0 : i1 to i32
    %c0_i32_0 = arith.constant 0 : i32
    %2 = arith.cmpi ne, %1, %c0_i32_0 : i32
    scf.if %2 {
      %c0_22 = arith.constant 0 : index
      %c0_23 = arith.constant 0 : index
      %32 = vector.load %arg1[%c0_22, %c0_23] : memref<16x128xbf16, #tpu.memory_space<vmem>>, vector<16x128xbf16>
      %c0_24 = arith.constant 0 : index
      %c0_25 = arith.constant 0 : index
      %33 = vector.load %arg5[%c0_24, %c0_25] : memref<16x128xbf16, #tpu.memory_space<vmem>>, vector<16x128xbf16>
      tpu.vector_store %arg5[%c0_24, %c0_25], %32 {strides = array<i32>} : memref<16x128xbf16, #tpu.memory_space<vmem>>, vector<16x128xbf16>,
    } else {
    }
    %c2_i32 = arith.constant 2 : i32
    %3 = arith.muli %arg0, %c2_i32 : i32
    %c0_i32_1 = arith.constant 0 : i32
    %4 = arith.addi %3, %c0_i32_1 : i32
    %c0 = arith.constant 0 : index
    %c0_2 = arith.constant 0 : index
    %5 = vector.load %arg5[%c0, %c0_2] : memref<16x128xbf16, #tpu.memory_space<vmem>>, vector<16x128xbf16>
    %c0_3 = arith.constant 0 : index
    %c0_4 = arith.constant 0 : index
    %c0_5 = arith.constant 0 : index
    %6 = vector.load %arg2[%c0_3, %c0_4, %c0_5] : memref<2x128x128xbf16, #tpu.memory_space<vmem>>, vector<1x128x128xbf16>
    %7 = vector.shape_cast %6 : vector<1x128x128xbf16> to vector<128x128xbf16>
    %cst = arith.constant dense<0.000000e+00> : vector<16x128xf32>
    %8 = tpu.matmul %5, %7, %cst {dimension_numbers = #tpu.dot_dimension_numbers<[1], [0], [0], [1], [0, 0, 1, 1], [], []>} : vector<16x128xbf16>, vector<128x128xbf16>, vector<16x128xf32> -> vector<16x128xf32>
    %c0_6 = arith.constant 0 : index
    %c0_7 = arith.constant 0 : index
    %c0_8 = arith.constant 0 : index
    %9 = vector.load %arg3[%c0_6, %c0_7, %c0_8] : memref<2x1x128xf32, #tpu.memory_space<vmem>>, vector<1x1x128xf32>
    %10 = vector.shape_cast %9 : vector<1x1x128xf32> to vector<1x128xf32>
    %11 = vector.broadcast %10 : vector<1x128xf32> to vector<16x128xf32>
    %12 = arith.addf %8, %11 : vector<16x128xf32>
    %c23_i32 = arith.constant 23 : i32
    %13 = arith.cmpi eq, %arg0, %c23_i32 : i32
    %14 = arith.extui %13 : i1 to i32
    %c0_i32_9 = arith.constant 0 : i32
    %15 = arith.cmpi ne, %14, %c0_i32_9 : i32
    scf.if %15 {
      %c0_22 = arith.constant 0 : index
      %c0_23 = arith.constant 0 : index
      %32 = vector.load %arg4[%c0_22, %c0_23] : memref<16x128xf32, #tpu.memory_space<vmem>>, vector<16x128xf32>
      tpu.vector_store %arg4[%c0_22, %c0_23], %12 {strides = array<i32>} : memref<16x128xf32, #tpu.memory_space<vmem>>, vector<16x128xf32>,
    } else {
    }
    %c46_i32 = arith.constant 46 : i32
    %16 = arith.cmpi slt, %4, %c46_i32 : i32
    %17 = arith.extui %16 : i1 to i32
    %c0_i32_10 = arith.constant 0 : i32
    %18 = arith.cmpi ne, %17, %c0_i32_10 : i32
    scf.if %18 {
      %cst_22 = arith.constant 0.000000e+00 : f32
      %32 = vector.broadcast %cst_22 : f32 to vector<16x128xf32>
      %33 = arith.maximumf %12, %32 : vector<16x128xf32>
      %34 = arith.truncf %33 : vector<16x128xf32> to vector<16x128xbf16>
      %c0_23 = arith.constant 0 : index
      %c0_24 = arith.constant 0 : index
      %35 = vector.load %arg5[%c0_23, %c0_24] : memref<16x128xbf16, #tpu.memory_space<vmem>>, vector<16x128xbf16>
      tpu.vector_store %arg5[%c0_23, %c0_24], %34 {strides = array<i32>} : memref<16x128xbf16, #tpu.memory_space<vmem>>, vector<16x128xbf16>,
    } else {
    }
    %c2_i32_11 = arith.constant 2 : i32
    %19 = arith.muli %arg0, %c2_i32_11 : i32
    %c1_i32 = arith.constant 1 : i32
    %20 = arith.addi %19, %c1_i32 : i32
    %c0_12 = arith.constant 0 : index
    %c0_13 = arith.constant 0 : index
    %21 = vector.load %arg5[%c0_12, %c0_13] : memref<16x128xbf16, #tpu.memory_space<vmem>>, vector<16x128xbf16>
    %c1 = arith.constant 1 : index
    %c0_14 = arith.constant 0 : index
    %c0_15 = arith.constant 0 : index
    %22 = vector.load %arg2[%c1, %c0_14, %c0_15] : memref<2x128x128xbf16, #tpu.memory_space<vmem>>, vector<1x128x128xbf16>
    %23 = vector.shape_cast %22 : vector<1x128x128xbf16> to vector<128x128xbf16>
    %cst_16 = arith.constant dense<0.000000e+00> : vector<16x128xf32>
    %24 = tpu.matmul %21, %23, %cst_16 {dimension_numbers = #tpu.dot_dimension_numbers<[1], [0], [0], [1], [0, 0, 1, 1], [], []>} : vector<16x128xbf16>, vector<128x128xbf16>, vector<16x128xf32> -> vector<16x128xf32>
    %c1_17 = arith.constant 1 : index
    %c0_18 = arith.constant 0 : index
    %c0_19 = arith.constant 0 : index
    %25 = vector.load %arg3[%c1_17, %c0_18, %c0_19] : memref<2x1x128xf32, #tpu.memory_space<vmem>>, vector<1x1x128xf32>
    %26 = vector.shape_cast %25 : vector<1x1x128xf32> to vector<1x128xf32>
    %27 = vector.broadcast %26 : vector<1x128xf32> to vector<16x128xf32>
    %28 = arith.addf %24, %27 : vector<16x128xf32>
    %c46_i32_20 = arith.constant 46 : i32
    %29 = arith.cmpi slt, %20, %c46_i32_20 : i32
    %30 = arith.extui %29 : i1 to i32
    %c0_i32_21 = arith.constant 0 : i32
    %31 = arith.cmpi ne, %30, %c0_i32_21 : i32
    scf.if %31 {
      %cst_22 = arith.constant 0.000000e+00 : f32
      %32 = vector.broadcast %cst_22 : f32 to vector<16x128xf32>
      %33 = arith.maximumf %28, %32 : vector<16x128xf32>
      %34 = arith.truncf %33 : vector<16x128xf32> to vector<16x128xbf16>
      %c0_23 = arith.constant 0 : index
      %c0_24 = arith.constant 0 : index
      %35 = vector.load %arg5[%c0_23, %c0_24] : memref<16x128xbf16, #tpu.memory_space<vmem>>, vector<16x128xbf16>
      tpu.vector_store %arg5[%c0_23, %c0_24], %34 {strides = array<i32>} : memref<16x128xbf16, #tpu.memory_space<vmem>>, vector<16x128xbf16>,
    } else {
    }
    return
  }
  func.func @transform_0(%arg0: i32) -> (i32, i32) {
    %c0_i32 = arith.constant 0 : i32
    %c0_i32_0 = arith.constant 0 : i32
    %c0_i32_1 = arith.constant 0 : i32
    return %c0_i32, %c0_i32_0 : i32, i32
  }
  func.func @transform_1(%arg0: i32) -> (i32, i32, i32) {
    %c0_i32 = arith.constant 0 : i32
    %c0_i32_0 = arith.constant 0 : i32
    %c0_i32_1 = arith.constant 0 : i32
    return %arg0, %c0_i32, %c0_i32_0 : i32, i32, i32
  }
  func.func @transform_2(%arg0: i32) -> (i32, i32, i32) {
    %c0_i32 = arith.constant 0 : i32
    %c0_i32_0 = arith.constant 0 : i32
    %c0_i32_1 = arith.constant 0 : i32
    return %arg0, %c0_i32, %c0_i32_0 : i32, i32, i32
  }
  func.func @transform_3(%arg0: i32) -> (i32, i32) {
    %c0_i32 = arith.constant 0 : i32
    %c0_i32_0 = arith.constant 0 : i32
    %c0_i32_1 = arith.constant 0 : i32
    return %c0_i32, %c0_i32_0 : i32, i32
  }
}

module attributes {stable_mosaic.version = 11 : i64} {
  func.func @_linear_kernel(%arg0: i32, %arg1: i32, %arg2: i32, %arg3: memref<16x768xbf16, #tpu.memory_space<vmem>>, %arg4: memref<768x256xbf16, #tpu.memory_space<vmem>>, %arg5: memref<1x256xf32, #tpu.memory_space<vmem>>, %arg6: memref<16x256xbf16, #tpu.memory_space<vmem>>, %arg7: memref<16x256xf32, #tpu.memory_space<vmem>>) attributes {dimension_semantics = [#tpu.dimension_semantics<parallel>, #tpu.dimension_semantics<parallel>, #tpu.dimension_semantics<arbitrary>], iteration_bounds = array<i64: 1, 1, 1>, scalar_prefetch = 0 : i64, scratch_operands = 1 : i64, tpu.core_type = #tpu.core_type<tc>, window_params = [{transform_indices = @transform_0, window_bounds = array<i64: 16, 768>}, {transform_indices = @transform_1, window_bounds = array<i64: 768, 256>}, {transform_indices = @transform_2, window_bounds = array<i64: 1, 256>}, {transform_indices = @transform_3, window_bounds = array<i64: 16, 256>}]} {
    %c0_i32 = arith.constant 0 : i32
    %0 = arith.cmpi eq, %arg2, %c0_i32 : i32
    %1 = arith.extui %0 : i1 to i32
    %c0_i32_0 = arith.constant 0 : i32
    %2 = arith.cmpi ne, %1, %c0_i32_0 : i32
    scf.if %2 {
      %c0_10 = arith.constant 0 : index
      %c0_11 = arith.constant 0 : index
      %12 = vector.load %arg5[%c0_10, %c0_11] : memref<1x256xf32, #tpu.memory_space<vmem>>, vector<1x256xf32>
      %13 = vector.shape_cast %12 : vector<1x256xf32> to vector<1x256xf32>
      %14 = vector.broadcast %13 : vector<1x256xf32> to vector<16x256xf32>
      %c0_12 = arith.constant 0 : index
      %c0_13 = arith.constant 0 : index
      %15 = vector.load %arg7[%c0_12, %c0_13] : memref<16x256xf32, #tpu.memory_space<vmem>>, vector<16x256xf32>
      tpu.vector_store %arg7[%c0_12, %c0_13], %14 {strides = array<i32>} : memref<16x256xf32, #tpu.memory_space<vmem>>, vector<16x256xf32>,
    } else {
    }
    %c0 = arith.constant 0 : index
    %c0_1 = arith.constant 0 : index
    %3 = vector.load %arg7[%c0, %c0_1] : memref<16x256xf32, #tpu.memory_space<vmem>>, vector<16x256xf32>
    %c0_2 = arith.constant 0 : index
    %c0_3 = arith.constant 0 : index
    %4 = vector.load %arg3[%c0_2, %c0_3] : memref<16x768xbf16, #tpu.memory_space<vmem>>, vector<16x768xbf16>
    %c0_4 = arith.constant 0 : index
    %c0_5 = arith.constant 0 : index
    %5 = vector.load %arg4[%c0_4, %c0_5] : memref<768x256xbf16, #tpu.memory_space<vmem>>, vector<768x256xbf16>
    %cst = arith.constant dense<0.000000e+00> : vector<16x256xf32>
    %6 = tpu.matmul %4, %5, %cst {dimension_numbers = #tpu.dot_dimension_numbers<[1], [0], [0], [1], [0, 0, 1, 1], [], []>} : vector<16x768xbf16>, vector<768x256xbf16>, vector<16x256xf32> -> vector<16x256xf32>
    %7 = arith.addf %3, %6 : vector<16x256xf32>
    %c0_6 = arith.constant 0 : index
    %c0_7 = arith.constant 0 : index
    %8 = vector.load %arg7[%c0_6, %c0_7] : memref<16x256xf32, #tpu.memory_space<vmem>>, vector<16x256xf32>
    tpu.vector_store %arg7[%c0_6, %c0_7], %7 {strides = array<i32>} : memref<16x256xf32, #tpu.memory_space<vmem>>, vector<16x256xf32>,
    %c0_i32_8 = arith.constant 0 : i32
    %9 = arith.cmpi eq, %arg2, %c0_i32_8 : i32
    %10 = arith.extui %9 : i1 to i32
    %c0_i32_9 = arith.constant 0 : i32
    %11 = arith.cmpi ne, %10, %c0_i32_9 : i32
    scf.if %11 {
      %c0_10 = arith.constant 0 : index
      %c0_11 = arith.constant 0 : index
      %12 = vector.load %arg7[%c0_10, %c0_11] : memref<16x256xf32, #tpu.memory_space<vmem>>, vector<16x256xf32>
      %cst_12 = arith.constant 0.000000e+00 : f32
      %13 = vector.broadcast %cst_12 : f32 to vector<16x256xf32>
      %14 = arith.maximumf %12, %13 : vector<16x256xf32>
      %15 = arith.truncf %14 : vector<16x256xf32> to vector<16x256xbf16>
      %c0_13 = arith.constant 0 : index
      %c0_14 = arith.constant 0 : index
      %16 = vector.load %arg6[%c0_13, %c0_14] : memref<16x256xbf16, #tpu.memory_space<vmem>>, vector<16x256xbf16>
      tpu.vector_store %arg6[%c0_13, %c0_14], %15 {strides = array<i32>} : memref<16x256xbf16, #tpu.memory_space<vmem>>, vector<16x256xbf16>,
    } else {
    }
    return
  }
  func.func @transform_0(%arg0: i32, %arg1: i32, %arg2: i32) -> (i32, i32) {
    %c0_i32 = arith.constant 0 : i32
    return %arg0, %arg2 : i32, i32
  }
  func.func @transform_1(%arg0: i32, %arg1: i32, %arg2: i32) -> (i32, i32) {
    %c0_i32 = arith.constant 0 : i32
    return %arg2, %arg1 : i32, i32
  }
  func.func @transform_2(%arg0: i32, %arg1: i32, %arg2: i32) -> (i32, i32) {
    %c0_i32 = arith.constant 0 : i32
    %c0_i32_0 = arith.constant 0 : i32
    return %c0_i32, %arg1 : i32, i32
  }
  func.func @transform_3(%arg0: i32, %arg1: i32, %arg2: i32) -> (i32, i32) {
    %c0_i32 = arith.constant 0 : i32
    return %arg0, %arg1 : i32, i32
  }
}

module attributes {stable_mosaic.version = 11 : i64} {
  func.func @_linear_kernel(%arg0: i32, %arg1: i32, %arg2: i32, %arg3: memref<16x256xbf16, #tpu.memory_space<vmem>>, %arg4: memref<256x128xbf16, #tpu.memory_space<vmem>>, %arg5: memref<1x128xf32, #tpu.memory_space<vmem>>, %arg6: memref<16x128xbf16, #tpu.memory_space<vmem>>, %arg7: memref<16x128xf32, #tpu.memory_space<vmem>>) attributes {dimension_semantics = [#tpu.dimension_semantics<parallel>, #tpu.dimension_semantics<parallel>, #tpu.dimension_semantics<arbitrary>], iteration_bounds = array<i64: 1, 1, 1>, scalar_prefetch = 0 : i64, scratch_operands = 1 : i64, tpu.core_type = #tpu.core_type<tc>, window_params = [{transform_indices = @transform_0, window_bounds = array<i64: 16, 256>}, {transform_indices = @transform_1, window_bounds = array<i64: 256, 128>}, {transform_indices = @transform_2, window_bounds = array<i64: 1, 128>}, {transform_indices = @transform_3, window_bounds = array<i64: 16, 128>}]} {
    %c0_i32 = arith.constant 0 : i32
    %0 = arith.cmpi eq, %arg2, %c0_i32 : i32
    %1 = arith.extui %0 : i1 to i32
    %c0_i32_0 = arith.constant 0 : i32
    %2 = arith.cmpi ne, %1, %c0_i32_0 : i32
    scf.if %2 {
      %c0_10 = arith.constant 0 : index
      %c0_11 = arith.constant 0 : index
      %12 = vector.load %arg5[%c0_10, %c0_11] : memref<1x128xf32, #tpu.memory_space<vmem>>, vector<1x128xf32>
      %13 = vector.shape_cast %12 : vector<1x128xf32> to vector<1x128xf32>
      %14 = vector.broadcast %13 : vector<1x128xf32> to vector<16x128xf32>
      %c0_12 = arith.constant 0 : index
      %c0_13 = arith.constant 0 : index
      %15 = vector.load %arg7[%c0_12, %c0_13] : memref<16x128xf32, #tpu.memory_space<vmem>>, vector<16x128xf32>
      tpu.vector_store %arg7[%c0_12, %c0_13], %14 {strides = array<i32>} : memref<16x128xf32, #tpu.memory_space<vmem>>, vector<16x128xf32>,
    } else {
    }
    %c0 = arith.constant 0 : index
    %c0_1 = arith.constant 0 : index
    %3 = vector.load %arg7[%c0, %c0_1] : memref<16x128xf32, #tpu.memory_space<vmem>>, vector<16x128xf32>
    %c0_2 = arith.constant 0 : index
    %c0_3 = arith.constant 0 : index
    %4 = vector.load %arg3[%c0_2, %c0_3] : memref<16x256xbf16, #tpu.memory_space<vmem>>, vector<16x256xbf16>
    %c0_4 = arith.constant 0 : index
    %c0_5 = arith.constant 0 : index
    %5 = vector.load %arg4[%c0_4, %c0_5] : memref<256x128xbf16, #tpu.memory_space<vmem>>, vector<256x128xbf16>
    %cst = arith.constant dense<0.000000e+00> : vector<16x128xf32>
    %6 = tpu.matmul %4, %5, %cst {dimension_numbers = #tpu.dot_dimension_numbers<[1], [0], [0], [1], [0, 0, 1, 1], [], []>} : vector<16x256xbf16>, vector<256x128xbf16>, vector<16x128xf32> -> vector<16x128xf32>
    %7 = arith.addf %3, %6 : vector<16x128xf32>
    %c0_6 = arith.constant 0 : index
    %c0_7 = arith.constant 0 : index
    %8 = vector.load %arg7[%c0_6, %c0_7] : memref<16x128xf32, #tpu.memory_space<vmem>>, vector<16x128xf32>
    tpu.vector_store %arg7[%c0_6, %c0_7], %7 {strides = array<i32>} : memref<16x128xf32, #tpu.memory_space<vmem>>, vector<16x128xf32>,
    %c0_i32_8 = arith.constant 0 : i32
    %9 = arith.cmpi eq, %arg2, %c0_i32_8 : i32
    %10 = arith.extui %9 : i1 to i32
    %c0_i32_9 = arith.constant 0 : i32
    %11 = arith.cmpi ne, %10, %c0_i32_9 : i32
    scf.if %11 {
      %c0_10 = arith.constant 0 : index
      %c0_11 = arith.constant 0 : index
      %12 = vector.load %arg7[%c0_10, %c0_11] : memref<16x128xf32, #tpu.memory_space<vmem>>, vector<16x128xf32>
      %cst_12 = arith.constant 0.000000e+00 : f32
      %13 = vector.broadcast %cst_12 : f32 to vector<16x128xf32>
      %14 = arith.maximumf %12, %13 : vector<16x128xf32>
      %15 = arith.truncf %14 : vector<16x128xf32> to vector<16x128xbf16>
      %c0_13 = arith.constant 0 : index
      %c0_14 = arith.constant 0 : index
      %16 = vector.load %arg6[%c0_13, %c0_14] : memref<16x128xbf16, #tpu.memory_space<vmem>>, vector<16x128xbf16>
      tpu.vector_store %arg6[%c0_13, %c0_14], %15 {strides = array<i32>} : memref<16x128xbf16, #tpu.memory_space<vmem>>, vector<16x128xbf16>,
    } else {
    }
    return
  }
  func.func @transform_0(%arg0: i32, %arg1: i32, %arg2: i32) -> (i32, i32) {
    %c0_i32 = arith.constant 0 : i32
    return %arg0, %arg2 : i32, i32
  }
  func.func @transform_1(%arg0: i32, %arg1: i32, %arg2: i32) -> (i32, i32) {
    %c0_i32 = arith.constant 0 : i32
    return %arg2, %arg1 : i32, i32
  }
  func.func @transform_2(%arg0: i32, %arg1: i32, %arg2: i32) -> (i32, i32) {
    %c0_i32 = arith.constant 0 : i32
    %c0_i32_0 = arith.constant 0 : i32
    return %c0_i32, %arg1 : i32, i32
  }
  func.func @transform_3(%arg0: i32, %arg1: i32, %arg2: i32) -> (i32, i32) {
    %c0_i32 = arith.constant 0 : i32
    return %arg0, %arg1 : i32, i32
  }
}

</mosaic_0001>

<llo_original>
// kernel: imagenet_narrow_mlp_forward.4
$region0: #{imagenet_narrow_mlp_forward.4}
  #allocation0 [shape = 'u32[]', space=smem, size = 0x4, offset = 0x4, fixed_abs, tag = 'smem constant byte address 0x4 - core index']
  #allocation1 [shape = 'u32[144,128]{1,0:T(1,128)}', space=vmem, size = 0x12000, scoped, tag = 'internal scratch']
  #allocation2 [shape = 'f32[16,128]{1,0:T(8,128)}', space=vmem, size = 0x2000, scoped, tag = 'scratch operand']
  %s0 = inlined_call_operand.vmem [shape: bf16[16,256], index: 0, kind: input, shape index: {}]
  %s1 = inlined_call_operand.hbm [shape: bf16[256,128], index: 1, kind: input, shape index: {}]
  %s2 = inlined_call_operand.hbm [shape: f32[1,128], index: 2, kind: input, shape index: {}]
  %s3 = inlined_call_operand.vmem [shape: bf16[16,128], index: 3, kind: output, shape index: {}]
  %s4 = sld [smem:[#allocation0]]
  $region38: #{imagenet_narrow_mlp_forward.4} parent=0
    _
  %s6 = ssub.s32 1, %s4
  %s7 = scalar_select 0, %s6, %s4
  $region1: #{imagenet_narrow_mlp_forward.4} parent=0
    #allocation3 [shape = 'u8[65536]{0}', space=vmem, size = 0x10000, scoped, tag = 'input window, operand 1, single buffered']
    #allocation4 [shape = 's32[1]{0}', space=sflag, size = 0x4, scoped, tag = 'scoped memory for imagenet_narrow_mlp_forward.4']
    #allocation5 [shape = 'u8[512]{0}', space=vmem, size = 0x400, scoped, tag = 'input window, operand 2, single buffered']
    #allocation6 [shape = 's32[1]{0}', space=sflag, size = 0x4, scoped, tag = 'scoped memory for imagenet_narrow_mlp_forward.4']
    %8 = vsyncpa [#allocation4], 0
    %9 = vsyncpa [#allocation6], 0
    // Predicated region
    $region2: #{imagenet_narrow_mlp_forward.4} parent=1 // pred_check
      _
    $region3: #{imagenet_narrow_mlp_forward.4} parent=1 // pred_check_branch
      %11 = sbr.rel (0) target = $region5
    $region4: #{imagenet_narrow_mlp_forward.4} parent=1 // pred_region
      _
    $region5: #{imagenet_narrow_mlp_forward.4} parent=1 // pred_fallthru
      _
    // Predicated region
    $region6: #{imagenet_narrow_mlp_forward.4} parent=1 // pred_check
      _
    $region7: #{imagenet_narrow_mlp_forward.4} parent=1 // pred_check_branch
      %13 = sbr.rel (0) target = $region9
    $region8: #{imagenet_narrow_mlp_forward.4} parent=1 // pred_region
      %s15 = ssub.s32 2048, 2048
      %16 = vsyncadd [#allocation4], %s15
      %s17 = sshll.u32 [#allocation3], 4
      %s18 = int_to_ptr.vmem [resolvable:$true] %s17
      %23 = dma.hbm_to_vmem [thread:$0]  %s1, 2048, %s18, [#allocation4], 64, 64, 4
    $region9: #{imagenet_narrow_mlp_forward.4} parent=1 // pred_fallthru
      _
    // Predicated region
    $region10: #{imagenet_narrow_mlp_forward.4} parent=1 // pred_check
      _
    $region11: #{imagenet_narrow_mlp_forward.4} parent=1 // pred_check_branch
      %25 = sbr.rel (0) target = $region13
    $region12: #{imagenet_narrow_mlp_forward.4} parent=1 // pred_region
      %s27 = ssub.s32 16, 16
      %28 = vsyncadd [#allocation6], %s27
      %s30 = sshll.u32 [#allocation5], 4
      %s31 = int_to_ptr.vmem [resolvable:$true] %s30
      %33 = dma.hbm_to_vmem [thread:$0]  %s2, 16, %s31, [#allocation6]
    $region13: #{imagenet_narrow_mlp_forward.4} parent=1 // pred_fallthru
      _
    // Predicated region
    $region14: #{imagenet_narrow_mlp_forward.4} parent=1 // pred_check
      _
    $region15: #{imagenet_narrow_mlp_forward.4} parent=1 // pred_check_branch
      %35 = sbr.rel (0) target = $region17
    $region16: #{imagenet_narrow_mlp_forward.4} parent=1 // pred_region
      %36 = dma.done [#allocation4], 2048
    $region17: #{imagenet_narrow_mlp_forward.4} parent=1 // pred_fallthru
      _
    // Predicated region
    $region18: #{imagenet_narrow_mlp_forward.4} parent=1 // pred_check
      _
    $region19: #{imagenet_narrow_mlp_forward.4} parent=1 // pred_check_branch
      %38 = sbr.rel (0) target = $region21
    $region20: #{imagenet_narrow_mlp_forward.4} parent=1 // pred_region
      %39 = dma.done [#allocation6], 16
    $region21: #{imagenet_narrow_mlp_forward.4} parent=1 // pred_fallthru
      _
    %p41 = scmp.eq.s32.totalorder 0, 0
    // Predicated region
    $region22: #{imagenet_narrow_mlp_forward.4} parent=1 // pred_check
      %p42 = pneg %p41
    $region23: #{imagenet_narrow_mlp_forward.4} parent=1 // pred_check_branch
      %44 = sbr.rel (%p42) target = $region25
    $region24: #{imagenet_narrow_mlp_forward.4} parent=1 // pred_region
      %v45 = vld [vmem:[#allocation5] sm:$0x1]
      %v47 = vlaneseq
      %v48 = vshrl.u32 %v47, 7
      %v49 = vsub.s32 0, %v48
      %v50 = vrot.slane %v45, %v49
      %52 = vst [vmem:[#allocation2] sm:$0xff] %v50
      %53 = vst [vmem:[#allocation2 + $0x8] sm:$0xff] %v50
    $region25: #{imagenet_narrow_mlp_forward.4} parent=1 // pred_fallthru
      _
    %v54 = vld [vmem:[#allocation2] sm:$0xff]
    %v55 = vld [vmem:[#allocation2 + $0x8] sm:$0xff]
    %v56 = vld [vmem:[%s0] sm:$0xff]
    %v57 = vld [vmem:[%s0 + $0x8] sm:$0xff]
    %v58 = vld [vmem:[#allocation3] sm:$0xf]
    %v59 = vld [vmem:[#allocation3 + $0x4] sm:$0xf]
    %v60 = vld [vmem:[#allocation3 + $0x8] sm:$0xf]
    %v61 = vld [vmem:[#allocation3 + $0xc] sm:$0xf]
    %v62 = vld [vmem:[#allocation3 + $0x10] sm:$0xf]
    %v63 = vld [vmem:[#allocation3 + $0x14] sm:$0xf]
    %v64 = vld [vmem:[#allocation3 + $0x18] sm:$0xf]
    %v65 = vld [vmem:[#allocation3 + $0x1c] sm:$0xf]
    %v66 = vld [vmem:[#allocation3 + $0x20] sm:$0xf]
    %v67 = vld [vmem:[#allocation3 + $0x24] sm:$0xf]
    %v68 = vld [vmem:[#allocation3 + $0x28] sm:$0xf]
    %v69 = vld [vmem:[#allocation3 + $0x2c] sm:$0xf]
    %v70 = vld [vmem:[#allocation3 + $0x30] sm:$0xf]
    %v71 = vld [vmem:[#allocation3 + $0x34] sm:$0xf]
    %v72 = vld [vmem:[#allocation3 + $0x38] sm:$0xf]
    %v73 = vld [vmem:[#allocation3 + $0x3c] sm:$0xf]
    %v74 = vld [vmem:[#allocation3 + $0x40] sm:$0xf]
    %v75 = vld [vmem:[#allocation3 + $0x44] sm:$0xf]
    %v76 = vld [vmem:[#allocation3 + $0x48] sm:$0xf]
    %v77 = vld [vmem:[#allocation3 + $0x4c] sm:$0xf]
    %v78 = vld [vmem:[#allocation3 + $0x50] sm:$0xf]
    %v79 = vld [vmem:[#allocation3 + $0x54] sm:$0xf]
    %v80 = vld [vmem:[#allocation3 + $0x58] sm:$0xf]
    %v81 = vld [vmem:[#allocation3 + $0x5c] sm:$0xf]
    %v82 = vld [vmem:[#allocation3 + $0x60] sm:$0xf]
    %v83 = vld [vmem:[#allocation3 + $0x64] sm:$0xf]
    %v84 = vld [vmem:[#allocation3 + $0x68] sm:$0xf]
    %v85 = vld [vmem:[#allocation3 + $0x6c] sm:$0xf]
    %v86 = vld [vmem:[#allocation3 + $0x70] sm:$0xf]
    %v87 = vld [vmem:[#allocation3 + $0x74] sm:$0xf]
    %v88 = vld [vmem:[#allocation3 + $0x78] sm:$0xf]
    %v89 = vld [vmem:[#allocation3 + $0x7c] sm:$0xf]
    %v92 = vunpack.c.l.b16 %v56
    %v93 = vunpack.c.h.b16 %v56
    %v94 = vunpack.c.l.b16 %v57
    %v95 = vunpack.c.h.b16 %v57
    %v96 = vpack.c.b16 %v94, %v92
    %v97 = vpack.c.b16 %v95, %v93
    %v132 = vunpack.c.l.b16 %v58
    %v133 = vunpack.c.l.b16 %v59
    %v134 = vunpack.c.l.b16 %v60
    %v135 = vunpack.c.l.b16 %v61
    %v136 = vunpack.c.l.b16 %v62
    %v137 = vunpack.c.l.b16 %v63
    %v138 = vunpack.c.l.b16 %v64
    %v139 = vunpack.c.l.b16 %v65
    %v140 = vunpack.c.l.b16 %v66
    %v141 = vunpack.c.l.b16 %v67
    %v142 = vunpack.c.l.b16 %v68
    %v143 = vunpack.c.l.b16 %v69
    %v144 = vunpack.c.l.b16 %v70
    %v145 = vunpack.c.l.b16 %v71
    %v146 = vunpack.c.l.b16 %v72
    %v147 = vunpack.c.l.b16 %v73
    %v148 = vunpack.c.l.b16 %v74
    %v149 = vunpack.c.l.b16 %v75
    %v150 = vunpack.c.l.b16 %v76
    %v151 = vunpack.c.l.b16 %v77
    %v152 = vunpack.c.l.b16 %v78
    %v153 = vunpack.c.l.b16 %v79
    %v154 = vunpack.c.l.b16 %v80
    %v155 = vunpack.c.l.b16 %v81
    %v156 = vunpack.c.l.b16 %v82
    %v157 = vunpack.c.l.b16 %v83
    %v158 = vunpack.c.l.b16 %v84
    %v159 = vunpack.c.l.b16 %v85
    %v160 = vunpack.c.l.b16 %v86
    %v161 = vunpack.c.l.b16 %v87
    %v162 = vunpack.c.l.b16 %v88
    %v163 = vunpack.c.l.b16 %v89
    %v164 = vpack.c.b16 %v133, %v132
    %v165 = vpack.c.b16 %v135, %v134
    %v166 = vpack.c.b16 %v137, %v136
    %v167 = vpack.c.b16 %v139, %v138
    %v168 = vpack.c.b16 %v141, %v140
    %v169 = vpack.c.b16 %v143, %v142
    %v170 = vpack.c.b16 %v145, %v144
    %v171 = vpack.c.b16 %v147, %v146
    %v172 = vpack.c.b16 %v149, %v148
    %v173 = vpack.c.b16 %v151, %v150
    %v174 = vpack.c.b16 %v153, %v152
    %v175 = vpack.c.b16 %v155, %v154
    %v176 = vpack.c.b16 %v157, %v156
    %v177 = vpack.c.b16 %v159, %v158
    %v178 = vpack.c.b16 %v161, %v160
    %v179 = vpack.c.b16 %v163, %v162
    %196 = vmatprep.subr.bf16.mxu0 0
    %197 = vmatpush1.bf16.msra.mxu0 %v171
    %198 = vmatprep.subr.bf16.mxu0 0
    %199 = vmatpush1.bf16.msra.mxu0 %v170
    %200 = vmatprep.subr.bf16.mxu0 0
    %201 = vmatpush1.bf16.msra.mxu0 %v169
    %202 = vmatprep.subr.bf16.mxu0 0
    %203 = vmatpush1.bf16.msra.mxu0 %v168
    %204 = vmatprep.subr.bf16.mxu0 0
    %205 = vmatpush1.bf16.msra.mxu0 %v167
    %206 = vmatprep.subr.bf16.mxu0 0
    %207 = vmatpush1.bf16.msra.mxu0 %v166
    %208 = vmatprep.subr.bf16.mxu0 0
    %209 = vmatpush1.bf16.msra.mxu0 %v165
    %210 = vmatprep.subr.bf16.mxu0 0
    %211 = vmatpush1.bf16.msra.mxu0 %v164
    %212 = vmatprep.subr.bf16.mxu0 0
    %213 = vmatpush2.bf16.msra.mxu0 %v179
    %214 = vmatprep.subr.bf16.mxu0 0
    %215 = vmatpush2.bf16.msra.mxu0 %v178
    %216 = vmatprep.subr.bf16.mxu0 0
    %217 = vmatpush2.bf16.msra.mxu0 %v177
    %218 = vmatprep.subr.bf16.mxu0 0
    %219 = vmatpush2.bf16.msra.mxu0 %v176
    %220 = vmatprep.subr.bf16.mxu0 0
    %221 = vmatpush2.bf16.msra.mxu0 %v175
    %222 = vmatprep.subr.bf16.mxu0 0
    %223 = vmatpush2.bf16.msra.mxu0 %v174
    %224 = vmatprep.subr.bf16.mxu0 0
    %225 = vmatpush2.bf16.msra.mxu0 %v173
    %226 = vmatprep.subr.bf16.mxu0 0
    %227 = vmatpush2.bf16.msra.mxu0 %v172
    %228 = vmatprep.mubr.bf16.mxu0 %v97
    %229 = vmatmul.mubr.bf16.gmra.mxu0 %v96
    %v230 = vpop.f32.mrf.mxu0
    %v231 = vadd.f32 0.0, %v230
    %v232 = vpop.f32.mrf.mxu0
    %v233 = vpop.f32.mrf.mxu0
    %v234 = vadd.f32 0.0, %v233
    %v235 = vpop.f32.mrf.mxu0
    %236 = vdwg.mxu0
    %v237 = vadd.f32 %v54, %v231
    %v238 = vadd.f32 %v55, %v234
    %239 = vst [vmem:[#allocation2] sm:$0xff] %v237
    %240 = vst [vmem:[#allocation2 + $0x8] sm:$0xff] %v238
    // Predicated region
    $region26: #{imagenet_narrow_mlp_forward.4} parent=1 // pred_check
      %p241 = pneg %p41
    $region27: #{imagenet_narrow_mlp_forward.4} parent=1 // pred_check_branch
      %243 = sbr.rel (%p241) target = $region29
    $region28: #{imagenet_narrow_mlp_forward.4} parent=1 // pred_region
      %v244 = vld [vmem:[#allocation2] sm:$0xff]
      %v245 = vld [vmem:[#allocation2 + $0x8] sm:$0xff]
      %v246 = vmax.f32 %v244, 0.0
      %v247 = vmax.f32 %v245, 0.0
      %v248 = vpack.c.bf16 %v247, %v246
      %v250 = vunpack.c.l.b16 %v248
      %v251 = vunpack.c.h.b16 %v248
      %v252 = vpack.c.b16 %v250, %v250
      %v253 = vpack.c.b16 %v251, %v251
      %256 = vst [vmem:[%s3] sm:$0xf] %v252
      %257 = vst [vmem:[%s3 + $0x4] sm:$0xf] %v253
    $region29: #{imagenet_narrow_mlp_forward.4} parent=1 // pred_fallthru
      _
    // Predicated region
    $region30: #{imagenet_narrow_mlp_forward.4} parent=1 // pred_check
      _
    $region31: #{imagenet_narrow_mlp_forward.4} parent=1 // pred_check_branch
      %259 = sbr.rel (0) target = $region33
    $region32: #{imagenet_narrow_mlp_forward.4} parent=1 // pred_region
      _
    $region33: #{imagenet_narrow_mlp_forward.4} parent=1 // pred_fallthru
      _
    // Predicated region
    $region34: #{imagenet_narrow_mlp_forward.4} parent=1 // pred_check
      _
    $region35: #{imagenet_narrow_mlp_forward.4} parent=1 // pred_check_branch
      %261 = sbr.rel (0) target = $region37
    $region36: #{imagenet_narrow_mlp_forward.4} parent=1 // pred_region
      _
    $region37: #{imagenet_narrow_mlp_forward.4} parent=1 // pred_fallthru
      _
    %262 = vsyncpa [#allocation4], 1
    %263 = vsyncpa [#allocation6], 1

// kernel: imagenet_narrow_mlp_forward.5
$region0: #{imagenet_narrow_mlp_forward.5}
  #allocation0 [shape = 'u32[]', space=smem, size = 0x4, offset = 0x4, fixed_abs, tag = 'smem constant byte address 0x4 - core index']
  #allocation1 [shape = 'u32[144,128]{1,0:T(1,128)}', space=vmem, size = 0x12000, scoped, tag = 'internal scratch']
  #allocation2 [shape = 'bf16[16,128]{1,0:T(8,128)(2,1)}', space=vmem, size = 0x1000, scoped, tag = 'scratch operand']
  %s0 = inlined_call_operand.vmem [shape: bf16[16,128], index: 0, kind: input, shape index: {}]
  %s1 = inlined_call_operand.vmem [shape: bf16[48,128,128], index: 1, kind: input, shape index: {}]
  %s2 = inlined_call_operand.vmem [shape: f32[48,1,128], index: 2, kind: input, shape index: {}]
  %s3 = inlined_call_operand.vmem [shape: f32[16,128], index: 3, kind: output, shape index: {}]
  %s4 = sld [smem:[#allocation0]]
  $region61: #{imagenet_narrow_mlp_forward.5} parent=0
    _
  %s6 = ssub.s32 1, %s4
  %s7 = scalar_select 0, %s6, %s4
  loop: start=0, step=1, limit=26
  $region2: #{imagenet_narrow_mlp_forward.5} parent=0 // loop_pre_header
    _
  $region3: #{imagenet_narrow_mlp_forward.5} parent=0 // loop_header
    %s9 = sphi 0, %s13
    %p10 = scmp.ge.s32.totalorder %s9, 26
    %s17 = sphi 0, %s17
    %s19 = sphi 0, %s17
    %s20 = sphi 0, %s19
    %s34 = sphi 0, %s20
    %s40 = sphi 0, %s42
    %s43 = sphi 0, %s40
    %s44 = sphi 0, %s43
    %s60 = sphi 0, %s44
    %s66 = sphi 0, %s68
    %s69 = sphi 0, %s66
    %s70 = sphi 0, %s69
    %s86 = sphi 0, %s70
    %s90 = sphi 0, %s90
    %s92 = sphi 0, %s90
    %s93 = sphi 0, %s92
    %s107 = sphi 0, %s93
  $region4: #{imagenet_narrow_mlp_forward.5} parent=0 // loop_header_branch
    %12 = sbr.rel (%p10) target = $region8
  $region5: #{imagenet_narrow_mlp_forward.5} parent=0 // loop_body
    %s14 = ssub.s32 %s9, 1
    %s15 = ssub.s32 %s9, 2
    %s16 = sadd.s32 %s9, 1
    %s18 = sadd.s32 %s17, 1
    %p21 = scmp.eq.s32.totalorder %s9, 23
    %p22 = scmp.ne.s32.totalorder %s17, %s19
    %p23 = scmp.eq.s32.totalorder %s9, 0
    %p24 = por %p22, %p23
    %p25 = scmp.ne.s32.totalorder %s17, %s19
    %p26 = scmp.eq.s32.totalorder %s14, 23
    %p27 = por %p25, %p26
    %p28 = scmp.ne.s32.totalorder %s19, %s20
    %p29 = scmp.eq.s32.totalorder %s14, 0
    %p30 = por %p28, %p29
    %p31 = scmp.ne.s32.totalorder %s19, %s20
    %p32 = scmp.eq.s32.totalorder %s15, 23
    %p33 = por %p31, %p32
    %p35 = scmp.ne.s32.totalorder %s20, %s34
    %p36 = scmp.eq.s32.totalorder %s15, 0
    %p37 = por %p35, %p36
    %s38 = ssub.s32 %s9, %s16
    %p39 = scmp.eq.s32.totalorder %s38, 0
    %s41 = sadd.s32 %s40, 1
    %s42 = scalar_select %p39, %s40, %s41
    %p45 = pneg %p39
    %p46 = scmp.eq.s32.totalorder %s9, 23
    %p47 = por %p45, %p46
    %p48 = scmp.ne.s32.totalorder %s40, %s43
    %p49 = scmp.eq.s32.totalorder %s9, 0
    %p50 = por %p48, %p49
    %p51 = scmp.ne.s32.totalorder %s40, %s43
    %p52 = scmp.eq.s32.totalorder %s14, 23
    %p53 = por %p51, %p52
    %p54 = scmp.ne.s32.totalorder %s43, %s44
    %p55 = scmp.eq.s32.totalorder %s14, 0
    %p56 = por %p54, %p55
    %p57 = scmp.ne.s32.totalorder %s43, %s44
    %p58 = scmp.eq.s32.totalorder %s15, 23
    %p59 = por %p57, %p58
    %p61 = scmp.ne.s32.totalorder %s44, %s60
    %p62 = scmp.eq.s32.totalorder %s15, 0
    %p63 = por %p61, %p62
    %s64 = ssub.s32 %s9, %s16
    %p65 = scmp.eq.s32.totalorder %s64, 0
    %s67 = sadd.s32 %s66, 1
    %s68 = scalar_select %p65, %s66, %s67
    %p71 = pneg %p65
    %p72 = scmp.eq.s32.totalorder %s9, 23
    %p73 = por %p71, %p72
    %p74 = scmp.ne.s32.totalorder %s66, %s69
    %p75 = scmp.eq.s32.totalorder %s9, 0
    %p76 = por %p74, %p75
    %p77 = scmp.ne.s32.totalorder %s66, %s69
    %p78 = scmp.eq.s32.totalorder %s14, 23
    %p79 = por %p77, %p78
    %p80 = scmp.ne.s32.totalorder %s69, %s70
    %p81 = scmp.eq.s32.totalorder %s14, 0
    %p82 = por %p80, %p81
    %p83 = scmp.ne.s32.totalorder %s69, %s70
    %p84 = scmp.eq.s32.totalorder %s15, 23
    %p85 = por %p83, %p84
    %p87 = scmp.ne.s32.totalorder %s70, %s86
    %p88 = scmp.eq.s32.totalorder %s15, 0
    %p89 = por %p87, %p88
    %s91 = sadd.s32 %s90, 1
    %p94 = scmp.eq.s32.totalorder %s9, 23
    %p95 = scmp.ne.s32.totalorder %s90, %s92
    %p96 = scmp.eq.s32.totalorder %s9, 0
    %p97 = por %p95, %p96
    %p98 = scmp.ne.s32.totalorder %s90, %s92
    %p99 = scmp.eq.s32.totalorder %s14, 23
    %p100 = por %p98, %p99
    %p101 = scmp.ne.s32.totalorder %s92, %s93
    %p102 = scmp.eq.s32.totalorder %s14, 0
    %p103 = por %p101, %p102
    %p104 = scmp.ne.s32.totalorder %s92, %s93
    %p105 = scmp.eq.s32.totalorder %s15, 23
    %p106 = por %p104, %p105
    %p108 = scmp.ne.s32.totalorder %s93, %s107
    %p109 = scmp.eq.s32.totalorder %s15, 0
    %p110 = por %p108, %p109
    %p111 = scmp.le.s32.totalorder 1, %s9
    %p112 = scmp.lt.s32.totalorder %s9, 25
    %p113 = pnand %p111, %p112
    %p114 = pneg %p113
    // Predicated region
    $region9: #{imagenet_narrow_mlp_forward.5} parent=5 // pred_check
      _
    $region10: #{imagenet_narrow_mlp_forward.5} parent=5 // pred_check_branch
      %116 = sbr.rel (%p113) target = $region12
    $region11: #{imagenet_narrow_mlp_forward.5} parent=5 // pred_region
      %s117 = ssub.s32 %s9, 1
      // Predicated region
      $region13: #{imagenet_narrow_mlp_forward.5} parent=11 // pred_check
        %p118 = pneg %p30
      $region14: #{imagenet_narrow_mlp_forward.5} parent=11 // pred_check_branch
        %120 = sbr.rel (%p118) target = $region16
      $region15: #{imagenet_narrow_mlp_forward.5} parent=11 // pred_region
        _
      $region16: #{imagenet_narrow_mlp_forward.5} parent=11 // pred_fallthru
        _
    $region12: #{imagenet_narrow_mlp_forward.5} parent=5 // pred_fallthru
      _
    %p121 = scmp.lt.s32.totalorder %s9, 24
    // Predicated region
    $region17: #{imagenet_narrow_mlp_forward.5} parent=5 // pred_check
      %p122 = pneg %p121
    $region18: #{imagenet_narrow_mlp_forward.5} parent=5 // pred_check_branch
      %124 = sbr.rel (%p122) target = $region20
    $region19: #{imagenet_narrow_mlp_forward.5} parent=5 // pred_region
      // Predicated region
      $region21: #{imagenet_narrow_mlp_forward.5} parent=19 // pred_check
        %p125 = pneg %p50
      $region22: #{imagenet_narrow_mlp_forward.5} parent=19 // pred_check_branch
        %127 = sbr.rel (%p125) target = $region24
      $region23: #{imagenet_narrow_mlp_forward.5} parent=19 // pred_region
        %s128 = smul.u32 2, %s9
        %p129 = scmp.lt.s32.totalorder %s128, 47
        %s130 = scalar_select %p129, %s128, 47
        %s131 = smul.addr %s130, 16
        %s132 = smul.addr %s131, 4
        %s133 = scalar_lea.vmem %s1, %s132
        %s134 = smul.u32 2, %s9
      $region24: #{imagenet_narrow_mlp_forward.5} parent=19 // pred_fallthru
        _
      // Predicated region
      $region25: #{imagenet_narrow_mlp_forward.5} parent=19 // pred_check
        %p135 = pneg %p76
      $region26: #{imagenet_narrow_mlp_forward.5} parent=19 // pred_check_branch
        %137 = sbr.rel (%p135) target = $region28
      $region27: #{imagenet_narrow_mlp_forward.5} parent=19 // pred_region
        %s138 = smul.u32 2, %s9
        %p139 = scmp.lt.s32.totalorder %s138, 47
        %s140 = scalar_select %p139, %s138, 47
        %s141 = scalar_lea.vmem %s2, %s140
        %s142 = smul.u32 2, %s9
      $region28: #{imagenet_narrow_mlp_forward.5} parent=19 // pred_fallthru
        _
    $region20: #{imagenet_narrow_mlp_forward.5} parent=5 // pred_fallthru
      _
    %p143 = scmp.le.s32.totalorder 1, %s9
    %p144 = scmp.lt.s32.totalorder %s9, 25
    %p145 = pnand %p143, %p144
    %p146 = pneg %p145
    // Predicated region
    $region29: #{imagenet_narrow_mlp_forward.5} parent=5 // pred_check
      _
    $region30: #{imagenet_narrow_mlp_forward.5} parent=5 // pred_check_branch
      %148 = sbr.rel (%p145) target = $region32
    $region31: #{imagenet_narrow_mlp_forward.5} parent=5 // pred_region
      %s149 = ssub.s32 %s9, 1
      %p150 = pneg %p30
      %p151 = pneg %p27
      %s152 = smul.u32 2, %s14
      %p153 = scmp.lt.s32.totalorder %s152, 47
      %s154 = scalar_select %p153, %s152, 47
      %s155 = smul.addr %s154, 16
      %s156 = smul.addr %s155, 4
      %s157 = scalar_lea.vmem %s1, %s156
      %p158 = pneg %p56
      %p159 = pneg %p53
      %s160 = smul.u32 2, %s14
      %p161 = scmp.lt.s32.totalorder %s160, 47
      %s162 = scalar_select %p161, %s160, 47
      %s163 = scalar_lea.vmem %s2, %s162
      %p164 = pneg %p82
      %p165 = pneg %p79
      %p166 = pneg %p103
      %p167 = pneg %p100
      %s168 = smul.u32 2, %s14
      %p169 = scmp.lt.s32.totalorder %s168, 47
      %s170 = scalar_select %p169, %s168, 47
      %s171 = smul.addr %s170, 16
      %s172 = smul.addr %s171, 4
      %s173 = scalar_lea.vmem %s1, %s172
      %s174 = smul.u32 2, %s14
      %s175 = smul.u32 2, %s14
      %p176 = scmp.lt.s32.totalorder %s175, 47
      %s177 = scalar_select %p176, %s175, 47
      %s178 = scalar_lea.vmem %s2, %s177
      %s179 = smul.u32 2, %s14
      %p181 = scmp.eq.s32.totalorder %s14, 0
      // Predicated region
      $region33: #{imagenet_narrow_mlp_forward.5} parent=31 // pred_check
        %p182 = pneg %p181
      $region34: #{imagenet_narrow_mlp_forward.5} parent=31 // pred_check_branch
        %184 = sbr.rel (%p182) target = $region36
      $region35: #{imagenet_narrow_mlp_forward.5} parent=31 // pred_region
        %v185 = vld [vmem:[%s0] sm:$0xf]
        %v186 = vld [vmem:[%s0 + $0x4] sm:$0xf]
        %187 = vst [vmem:[#allocation2] sm:$0xf] %v185
        %188 = vst [vmem:[#allocation2 + $0x4] sm:$0xf] %v186
      $region36: #{imagenet_narrow_mlp_forward.5} parent=31 // pred_fallthru
        _
      %s189 = smul.u32 %s14, 2
      %v190 = vld [vmem:[#allocation2] sm:$0xf]
      %v191 = vld [vmem:[#allocation2 + $0x4] sm:$0xf]
      %v192 = vld [vmem:[%s173] sm:$0xf]
      %v193 = vld [vmem:[%s173 + $0x4] sm:$0xf]
      %v194 = vld [vmem:[%s173 + $0x8] sm:$0xf]
      %v195 = vld [vmem:[%s173 + $0xc] sm:$0xf]
      %v196 = vld [vmem:[%s173 + $0x10] sm:$0xf]
      %v197 = vld [vmem:[%s173 + $0x14] sm:$0xf]
      %v198 = vld [vmem:[%s173 + $0x18] sm:$0xf]
      %v199 = vld [vmem:[%s173 + $0x1c] sm:$0xf]
      %v200 = vld [vmem:[%s173 + $0x20] sm:$0xf]
      %v201 = vld [vmem:[%s173 + $0x24] sm:$0xf]
      %v202 = vld [vmem:[%s173 + $0x28] sm:$0xf]
      %v203 = vld [vmem:[%s173 + $0x2c] sm:$0xf]
      %v204 = vld [vmem:[%s173 + $0x30] sm:$0xf]
      %v205 = vld [vmem:[%s173 + $0x34] sm:$0xf]
      %v206 = vld [vmem:[%s173 + $0x38] sm:$0xf]
      %v207 = vld [vmem:[%s173 + $0x3c] sm:$0xf]
      %v208 = vld [vmem:[%s178] sm:$0x1]
      %v210 = vlaneseq
      %v211 = vshrl.u32 %v210, 7
      %v212 = vsub.s32 0, %v211
      %v213 = vrot.slane %v208, %v212
      %v217 = vunpack.c.l.b16 %v190
      %v218 = vunpack.c.l.b16 %v191
      %v219 = vpack.c.b16 %v218, %v217
      %v237 = vunpack.c.l.b16 %v192
      %v238 = vunpack.c.l.b16 %v193
      %v239 = vunpack.c.l.b16 %v194
      %v240 = vunpack.c.l.b16 %v195
      %v241 = vunpack.c.l.b16 %v196
      %v242 = vunpack.c.l.b16 %v197
      %v243 = vunpack.c.l.b16 %v198
      %v244 = vunpack.c.l.b16 %v199
      %v245 = vunpack.c.l.b16 %v200
      %v246 = vunpack.c.l.b16 %v201
      %v247 = vunpack.c.l.b16 %v202
      %v248 = vunpack.c.l.b16 %v203
      %v249 = vunpack.c.l.b16 %v204
      %v250 = vunpack.c.l.b16 %v205
      %v251 = vunpack.c.l.b16 %v206
      %v252 = vunpack.c.l.b16 %v207
      %v253 = vpack.c.b16 %v238, %v237
      %v254 = vpack.c.b16 %v240, %v239
      %v255 = vpack.c.b16 %v242, %v241
      %v256 = vpack.c.b16 %v244, %v243
      %v257 = vpack.c.b16 %v246, %v245
      %v258 = vpack.c.b16 %v248, %v247
      %v259 = vpack.c.b16 %v250, %v249
      %v260 = vpack.c.b16 %v252, %v251
      %269 = vmatprep.subr.bf16.mxu0 0
      %270 = vmatpush1.bf16.msra.mxu0 %v260
      %271 = vmatprep.subr.bf16.mxu0 0
      %272 = vmatpush1.bf16.msra.mxu0 %v259
      %273 = vmatprep.subr.bf16.mxu0 0
      %274 = vmatpush1.bf16.msra.mxu0 %v258
      %275 = vmatprep.subr.bf16.mxu0 0
      %276 = vmatpush1.bf16.msra.mxu0 %v257
      %277 = vmatprep.subr.bf16.mxu0 0
      %278 = vmatpush1.bf16.msra.mxu0 %v256
      %279 = vmatprep.subr.bf16.mxu0 0
      %280 = vmatpush1.bf16.msra.mxu0 %v255
      %281 = vmatprep.subr.bf16.mxu0 0
      %282 = vmatpush1.bf16.msra.mxu0 %v254
      %283 = vmatprep.subr.bf16.mxu0 0
      %284 = vmatpush1.bf16.msra.mxu0 %v253
      %285 = vmatprep.subr.bf16.mxu0 0
      %286 = vmatpush2.bf16.msra.mxu0 0
      %287 = vmatprep.subr.bf16.mxu0 0
      %288 = vmatpush2.bf16.msra.mxu0 0
      %289 = vmatprep.subr.bf16.mxu0 0
      %290 = vmatpush2.bf16.msra.mxu0 0
      %291 = vmatprep.subr.bf16.mxu0 0
      %292 = vmatpush2.bf16.msra.mxu0 0
      %293 = vmatprep.subr.bf16.mxu0 0
      %294 = vmatpush2.bf16.msra.mxu0 0
      %295 = vmatprep.subr.bf16.mxu0 0
      %296 = vmatpush2.bf16.msra.mxu0 0
      %297 = vmatprep.subr.bf16.mxu0 0
      %298 = vmatpush2.bf16.msra.mxu0 0
      %299 = vmatprep.subr.bf16.mxu0 0
      %300 = vmatpush2.bf16.msra.mxu0 0
      %301 = vmatprep.mubr.bf16.mxu0 0
      %302 = vmatmul.mubr.bf16.gmra.mxu0 %v219
      %v303 = vpop.f32.mrf.mxu0
      %v304 = vadd.f32 %v213, %v303
      %v305 = vpop.f32.mrf.mxu0
      %v306 = vpop.f32.mrf.mxu0
      %v307 = vadd.f32 %v213, %v306
      %v308 = vpop.f32.mrf.mxu0
      %309 = vdwg.mxu0
      %p310 = scmp.eq.s32.totalorder %s14, 23
      // Predicated region
      $region37: #{imagenet_narrow_mlp_forward.5} parent=31 // pred_check
        %p311 = pneg %p310
      $region38: #{imagenet_narrow_mlp_forward.5} parent=31 // pred_check_branch
        %313 = sbr.rel (%p311) target = $region40
      $region39: #{imagenet_narrow_mlp_forward.5} parent=31 // pred_region
        %314 = vst [vmem:[%s3] sm:$0xff] %v304
        %315 = vst [vmem:[%s3 + $0x8] sm:$0xff] %v307
      $region40: #{imagenet_narrow_mlp_forward.5} parent=31 // pred_fallthru
        _
      %p316 = scmp.lt.s32.totalorder %s189, 46
      // Predicated region
      $region41: #{imagenet_narrow_mlp_forward.5} parent=31 // pred_check
        %p317 = pneg %p316
      $region42: #{imagenet_narrow_mlp_forward.5} parent=31 // pred_check_branch
        %319 = sbr.rel (%p317) target = $region44
      $region43: #{imagenet_narrow_mlp_forward.5} parent=31 // pred_region
        %v320 = vmax.f32 %v304, 0.0
        %v321 = vmax.f32 %v307, 0.0
        %v322 = vpack.c.bf16 %v321, %v320
        %v324 = vunpack.c.l.b16 %v322
        %v325 = vunpack.c.h.b16 %v322
        %v326 = vpack.c.b16 %v324, %v324
        %v327 = vpack.c.b16 %v325, %v325
        %330 = vst [vmem:[#allocation2] sm:$0xf] %v326
        %331 = vst [vmem:[#allocation2 + $0x4] sm:$0xf] %v327
      $region44: #{imagenet_narrow_mlp_forward.5} parent=31 // pred_fallthru
        _
      %s332 = sadd.s32 %s189, 1
      %v333 = vld [vmem:[#allocation2] sm:$0xf]
      %v334 = vld [vmem:[#allocation2 + $0x4] sm:$0xf]
      %s335 = scalar_lea.vmem %s173, 64
      %v336 = vld [vmem:[%s335] sm:$0xf]
      %v337 = vld [vmem:[%s335 + $0x4] sm:$0xf]
      %v338 = vld [vmem:[%s335 + $0x8] sm:$0xf]
      %v339 = vld [vmem:[%s335 + $0xc] sm:$0xf]
      %v340 = vld [vmem:[%s335 + $0x10] sm:$0xf]
      %v341 = vld [vmem:[%s335 + $0x14] sm:$0xf]
      %v342 = vld [vmem:[%s335 + $0x18] sm:$0xf]
      %v343 = vld [vmem:[%s335 + $0x1c] sm:$0xf]
      %v344 = vld [vmem:[%s335 + $0x20] sm:$0xf]
      %v345 = vld [vmem:[%s335 + $0x24] sm:$0xf]
      %v346 = vld [vmem:[%s335 + $0x28] sm:$0xf]
      %v347 = vld [vmem:[%s335 + $0x2c] sm:$0xf]
      %v348 = vld [vmem:[%s335 + $0x30] sm:$0xf]
      %v349 = vld [vmem:[%s335 + $0x34] sm:$0xf]
      %v350 = vld [vmem:[%s335 + $0x38] sm:$0xf]
      %v351 = vld [vmem:[%s335 + $0x3c] sm:$0xf]
      %s352 = scalar_lea.vmem %s178, 1
      %v353 = vld [vmem:[%s352] sm:$0x1]
      %v355 = vlaneseq
      %v356 = vshrl.u32 %v355, 7
      %v357 = vsub.s32 0, %v356
      %v358 = vrot.slane %v353, %v357
      %v362 = vunpack.c.l.b16 %v333
      %v363 = vunpack.c.l.b16 %v334
      %v364 = vpack.c.b16 %v363, %v362
      %v382 = vunpack.c.l.b16 %v336
      %v383 = vunpack.c.l.b16 %v337
      %v384 = vunpack.c.l.b16 %v338
      %v385 = vunpack.c.l.b16 %v339
      %v386 = vunpack.c.l.b16 %v340
      %v387 = vunpack.c.l.b16 %v341
      %v388 = vunpack.c.l.b16 %v342
      %v389 = vunpack.c.l.b16 %v343
      %v390 = vunpack.c.l.b16 %v344
      %v391 = vunpack.c.l.b16 %v345
      %v392 = vunpack.c.l.b16 %v346
      %v393 = vunpack.c.l.b16 %v347
      %v394 = vunpack.c.l.b16 %v348
      %v395 = vunpack.c.l.b16 %v349
      %v396 = vunpack.c.l.b16 %v350
      %v397 = vunpack.c.l.b16 %v351
      %v398 = vpack.c.b16 %v383, %v382
      %v399 = vpack.c.b16 %v385, %v384
      %v400 = vpack.c.b16 %v387, %v386
      %v401 = vpack.c.b16 %v389, %v388
      %v402 = vpack.c.b16 %v391, %v390
      %v403 = vpack.c.b16 %v393, %v392
      %v404 = vpack.c.b16 %v395, %v394
      %v405 = vpack.c.b16 %v397, %v396
      %414 = vmatprep.subr.bf16.mxu0 0
      %415 = vmatpush1.bf16.msra.mxu0 %v405
      %416 = vmatprep.subr.bf16.mxu0 0
      %417 = vmatpush1.bf16.msra.mxu0 %v404
      %418 = vmatprep.subr.bf16.mxu0 0
      %419 = vmatpush1.bf16.msra.mxu0 %v403
      %420 = vmatprep.subr.bf16.mxu0 0
      %421 = vmatpush1.bf16.msra.mxu0 %v402
      %422 = vmatprep.subr.bf16.mxu0 0
      %423 = vmatpush1.bf16.msra.mxu0 %v401
      %424 = vmatprep.subr.bf16.mxu0 0
      %425 = vmatpush1.bf16.msra.mxu0 %v400
      %426 = vmatprep.subr.bf16.mxu0 0
      %427 = vmatpush1.bf16.msra.mxu0 %v399
      %428 = vmatprep.subr.bf16.mxu0 0
      %429 = vmatpush1.bf16.msra.mxu0 %v398
      %430 = vmatprep.subr.bf16.mxu0 0
      %431 = vmatpush2.bf16.msra.mxu0 0
      %432 = vmatprep.subr.bf16.mxu0 0
      %433 = vmatpush2.bf16.msra.mxu0 0
      %434 = vmatprep.subr.bf16.mxu0 0
      %435 = vmatpush2.bf16.msra.mxu0 0
      %436 = vmatprep.subr.bf16.mxu0 0
      %437 = vmatpush2.bf16.msra.mxu0 0
      %438 = vmatprep.subr.bf16.mxu0 0
      %439 = vmatpush2.bf16.msra.mxu0 0
      %440 = vmatprep.subr.bf16.mxu0 0
      %441 = vmatpush2.bf16.msra.mxu0 0
      %442 = vmatprep.subr.bf16.mxu0 0
      %443 = vmatpush2.bf16.msra.mxu0 0
      %444 = vmatprep.subr.bf16.mxu0 0
      %445 = vmatpush2.bf16.msra.mxu0 0
      %446 = vmatprep.mubr.bf16.mxu0 0
      %447 = vmatmul.mubr.bf16.gmra.mxu0 %v364
      %v448 = vpop.f32.mrf.mxu0
      %v449 = vadd.f32 %v358, %v448
      %v450 = vpop.f32.mrf.mxu0
      %v451 = vpop.f32.mrf.mxu0
      %v452 = vadd.f32 %v358, %v451
      %v453 = vpop.f32.mrf.mxu0
      %454 = vdwg.mxu0
      %p455 = scmp.lt.s32.totalorder %s332, 46
      // Predicated region
      $region45: #{imagenet_narrow_mlp_forward.5} parent=31 // pred_check
        %p456 = pneg %p455
      $region46: #{imagenet_narrow_mlp_forward.5} parent=31 // pred_check_branch
        %458 = sbr.rel (%p456) target = $region48
      $region47: #{imagenet_narrow_mlp_forward.5} parent=31 // pred_region
        %v459 = vmax.f32 %v449, 0.0
        %v460 = vmax.f32 %v452, 0.0
        %v461 = vpack.c.bf16 %v460, %v459
        %v463 = vunpack.c.l.b16 %v461
        %v464 = vunpack.c.h.b16 %v461
        %v465 = vpack.c.b16 %v463, %v463
        %v466 = vpack.c.b16 %v464, %v464
        %469 = vst [vmem:[#allocation2] sm:$0xf] %v465
        %470 = vst [vmem:[#allocation2 + $0x4] sm:$0xf] %v466
      $region48: #{imagenet_narrow_mlp_forward.5} parent=31 // pred_fallthru
        _
      // Predicated region
      $region49: #{imagenet_narrow_mlp_forward.5} parent=31 // pred_check
        %p471 = pneg %p100
      $region50: #{imagenet_narrow_mlp_forward.5} parent=31 // pred_check_branch
        %473 = sbr.rel (%p471) target = $region52
      $region51: #{imagenet_narrow_mlp_forward.5} parent=31 // pred_region
        _
      $region52: #{imagenet_narrow_mlp_forward.5} parent=31 // pred_fallthru
        _
      // Predicated region
      $region53: #{imagenet_narrow_mlp_forward.5} parent=31 // pred_check
        %p474 = pneg %p100
      $region54: #{imagenet_narrow_mlp_forward.5} parent=31 // pred_check_branch
        %476 = sbr.rel (%p474) target = $region56
      $region55: #{imagenet_narrow_mlp_forward.5} parent=31 // pred_region
        _
      $region56: #{imagenet_narrow_mlp_forward.5} parent=31 // pred_fallthru
        _
    $region32: #{imagenet_narrow_mlp_forward.5} parent=5 // pred_fallthru
      _
    %p477 = scmp.le.s32.totalorder 2, %s9
    // Predicated region
    $region57: #{imagenet_narrow_mlp_forward.5} parent=5 // pred_check
      %p478 = pneg %p477
    $region58: #{imagenet_narrow_mlp_forward.5} parent=5 // pred_check_branch
      %480 = sbr.rel (%p478) target = $region60
    $region59: #{imagenet_narrow_mlp_forward.5} parent=5 // pred_region
      %s481 = ssub.s32 %s9, 2
    $region60: #{imagenet_narrow_mlp_forward.5} parent=5 // pred_fallthru
      _
  $region6: #{imagenet_narrow_mlp_forward.5} parent=0 // loop_footer
    %s13 = sadd.s32 1, %s9
  $region7: #{imagenet_narrow_mlp_forward.5} parent=0 // loop_footer_branch
    %8 = sbr.rel target = $region3
  $region8: #{imagenet_narrow_mlp_forward.5} parent=0 // loop_exit
    _

// kernel: imagenet_narrow_mlp_forward.3
$region0: #{imagenet_narrow_mlp_forward.3}
  #allocation0 [shape = 'u32[]', space=smem, size = 0x4, offset = 0x4, fixed_abs, tag = 'smem constant byte address 0x4 - core index']
  #allocation1 [shape = 'u32[144,128]{1,0:T(1,128)}', space=vmem, size = 0x12000, scoped, tag = 'internal scratch']
  #allocation2 [shape = 'f32[16,256]{1,0:T(8,128)}', space=vmem, size = 0x4000, scoped, tag = 'scratch operand']
  %s0 = inlined_call_operand.vmem [shape: bf16[16,768], index: 0, kind: input, shape index: {}]
  %s1 = inlined_call_operand.hbm [shape: bf16[768,256], index: 1, kind: input, shape index: {}]
  %s2 = inlined_call_operand.hbm [shape: f32[1,256], index: 2, kind: input, shape index: {}]
  %s3 = inlined_call_operand.vmem [shape: bf16[16,256], index: 3, kind: output, shape index: {}]
  %s4 = sld [smem:[#allocation0]]
  $region38: #{imagenet_narrow_mlp_forward.3} parent=0
    _
  %s6 = ssub.s32 1, %s4
  %s7 = scalar_select 0, %s6, %s4
  $region1: #{imagenet_narrow_mlp_forward.3} parent=0
    #allocation3 [shape = 'u8[393216]{0}', space=vmem, size = 0x60000, scoped, tag = 'input window, operand 1, single buffered']
    #allocation4 [shape = 's32[1]{0}', space=sflag, size = 0x4, scoped, tag = 'scoped memory for imagenet_narrow_mlp_forward.3']
    #allocation5 [shape = 'u8[1024]{0}', space=vmem, size = 0x400, scoped, tag = 'input window, operand 2, single buffered']
    #allocation6 [shape = 's32[1]{0}', space=sflag, size = 0x4, scoped, tag = 'scoped memory for imagenet_narrow_mlp_forward.3']
    %8 = vsyncpa [#allocation4], 0
    %9 = vsyncpa [#allocation6], 0
    // Predicated region
    $region2: #{imagenet_narrow_mlp_forward.3} parent=1 // pred_check
      _
    $region3: #{imagenet_narrow_mlp_forward.3} parent=1 // pred_check_branch
      %11 = sbr.rel (0) target = $region5
    $region4: #{imagenet_narrow_mlp_forward.3} parent=1 // pred_region
      _
    $region5: #{imagenet_narrow_mlp_forward.3} parent=1 // pred_fallthru
      _
    // Predicated region
    $region6: #{imagenet_narrow_mlp_forward.3} parent=1 // pred_check
      _
    $region7: #{imagenet_narrow_mlp_forward.3} parent=1 // pred_check_branch
      %13 = sbr.rel (0) target = $region9
    $region8: #{imagenet_narrow_mlp_forward.3} parent=1 // pred_region
      %s15 = ssub.s32 12288, 12288
      %16 = vsyncadd [#allocation4], %s15
      %s17 = sshll.u32 [#allocation3], 4
      %s18 = int_to_ptr.vmem [resolvable:$true] %s17
      %23 = dma.hbm_to_vmem [thread:$0]  %s1, 12288, %s18, [#allocation4], 128, 128, 8
    $region9: #{imagenet_narrow_mlp_forward.3} parent=1 // pred_fallthru
      _
    // Predicated region
    $region10: #{imagenet_narrow_mlp_forward.3} parent=1 // pred_check
      _
    $region11: #{imagenet_narrow_mlp_forward.3} parent=1 // pred_check_branch
      %25 = sbr.rel (0) target = $region13
    $region12: #{imagenet_narrow_mlp_forward.3} parent=1 // pred_region
      %s27 = ssub.s32 32, 32
      %28 = vsyncadd [#allocation6], %s27
      %s30 = sshll.u32 [#allocation5], 4
      %s31 = int_to_ptr.vmem [resolvable:$true] %s30
      %33 = dma.hbm_to_vmem [thread:$0]  %s2, 32, %s31, [#allocation6]
    $region13: #{imagenet_narrow_mlp_forward.3} parent=1 // pred_fallthru
      _
    // Predicated region
    $region14: #{imagenet_narrow_mlp_forward.3} parent=1 // pred_check
      _
    $region15: #{imagenet_narrow_mlp_forward.3} parent=1 // pred_check_branch
      %35 = sbr.rel (0) target = $region17
    $region16: #{imagenet_narrow_mlp_forward.3} parent=1 // pred_region
      %36 = dma.done [#allocation4], 12288
    $region17: #{imagenet_narrow_mlp_forward.3} parent=1 // pred_fallthru
      _
    // Predicated region
    $region18: #{imagenet_narrow_mlp_forward.3} parent=1 // pred_check
      _
    $region19: #{imagenet_narrow_mlp_forward.3} parent=1 // pred_check_branch
      %38 = sbr.rel (0) target = $region21
    $region20: #{imagenet_narrow_mlp_forward.3} parent=1 // pred_region
      %39 = dma.done [#allocation6], 32
    $region21: #{imagenet_narrow_mlp_forward.3} parent=1 // pred_fallthru
      _
    %p40 = scmp.eq.s32.totalorder 0, 0
    // Predicated region
    $region22: #{imagenet_narrow_mlp_forward.3} parent=1 // pred_check
      %p41 = pneg %p40
    $region23: #{imagenet_narrow_mlp_forward.3} parent=1 // pred_check_branch
      %43 = sbr.rel (%p41) target = $region25
    $region24: #{imagenet_narrow_mlp_forward.3} parent=1 // pred_region
      %v44 = vld [vmem:[#allocation5] sm:$0x3]
      %v46 = vlaneseq
      %v47 = vshrl.u32 %v46, 7
      %v48 = vsub.s32 0, %v47
      %v49 = vrot.slane %v44, %v48
      %v50 = vlaneseq
      %v51 = vshrl.u32 %v50, 7
      %v52 = vsub.s32 1, %v51
      %v53 = vrot.slane %v44, %v52
      %56 = vst [vmem:[#allocation2] sm:$0xff] %v49
      %57 = vst [vmem:[#allocation2 + $0x8] sm:$0xff] %v53
      %58 = vst [vmem:[#allocation2 + $0x10] sm:$0xff] %v49
      %59 = vst [vmem:[#allocation2 + $0x18] sm:$0xff] %v53
    $region25: #{imagenet_narrow_mlp_forward.3} parent=1 // pred_fallthru
      _
    %v60 = vld [vmem:[#allocation2] sm:$0xff]
    %v61 = vld [vmem:[#allocation2 + $0x8] sm:$0xff]
    %v62 = vld [vmem:[#allocation2 + $0x10] sm:$0xff]
    %v63 = vld [vmem:[#allocation2 + $0x18] sm:$0xff]
    %v64 = vld [vmem:[%s0] sm:$0xff]
    %v65 = vld [vmem:[%s0 + $0x8] sm:$0xff]
    %v66 = vld [vmem:[%s0 + $0x10] sm:$0xff]
    %v67 = vld [vmem:[%s0 + $0x18] sm:$0xff]
    %v68 = vld [vmem:[%s0 + $0x20] sm:$0xff]
    %v69 = vld [vmem:[%s0 + $0x28] sm:$0xff]
    %v70 = vld [vmem:[#allocation3] sm:$0xff]
    %v71 = vld [vmem:[#allocation3 + $0x8] sm:$0xff]
    %v72 = vld [vmem:[#allocation3 + $0x10] sm:$0xff]
    %v73 = vld [vmem:[#allocation3 + $0x18] sm:$0xff]
    %v74 = vld [vmem:[#allocation3 + $0x20] sm:$0xff]
    %v75 = vld [vmem:[#allocation3 + $0x28] sm:$0xff]
    %v76 = vld [vmem:[#allocation3 + $0x30] sm:$0xff]
    %v77 = vld [vmem:[#allocation3 + $0x38] sm:$0xff]
    %v78 = vld [vmem:[#allocation3 + $0x40] sm:$0xff]
    %v79 = vld [vmem:[#allocation3 + $0x48] sm:$0xff]
    %v80 = vld [vmem:[#allocation3 + $0x50] sm:$0xff]
    %v81 = vld [vmem:[#allocation3 + $0x58] sm:$0xff]
    %v82 = vld [vmem:[#allocation3 + $0x60] sm:$0xff]
    %v83 = vld [vmem:[#allocation3 + $0x68] sm:$0xff]
    %v84 = vld [vmem:[#allocation3 + $0x70] sm:$0xff]
    %v85 = vld [vmem:[#allocation3 + $0x78] sm:$0xff]
    %v86 = vld [vmem:[#allocation3 + $0x80] sm:$0xff]
    %v87 = vld [vmem:[#allocation3 + $0x88] sm:$0xff]
    %v88 = vld [vmem:[#allocation3 + $0x90] sm:$0xff]
    %v89 = vld [vmem:[#allocation3 + $0x98] sm:$0xff]
    %v90 = vld [vmem:[#allocation3 + $0xa0] sm:$0xff]
    %v91 = vld [vmem:[#allocation3 + $0xa8] sm:$0xff]
    %v92 = vld [vmem:[#allocation3 + $0xb0] sm:$0xff]
    %v93 = vld [vmem:[#allocation3 + $0xb8] sm:$0xff]
    %v94 = vld [vmem:[#allocation3 + $0xc0] sm:$0xff]
    %v95 = vld [vmem:[#allocation3 + $0xc8] sm:$0xff]
    %v96 = vld [vmem:[#allocation3 + $0xd0] sm:$0xff]
    %v97 = vld [vmem:[#allocation3 + $0xd8] sm:$0xff]
    %v98 = vld [vmem:[#allocation3 + $0xe0] sm:$0xff]
    %v99 = vld [vmem:[#allocation3 + $0xe8] sm:$0xff]
    %v100 = vld [vmem:[#allocation3 + $0xf0] sm:$0xff]
    %v101 = vld [vmem:[#allocation3 + $0xf8] sm:$0xff]
    %v102 = vld [vmem:[#allocation3 + $0x100] sm:$0xff]
    %v103 = vld [vmem:[#allocation3 + $0x108] sm:$0xff]
    %v104 = vld [vmem:[#allocation3 + $0x110] sm:$0xff]
    %v105 = vld [vmem:[#allocation3 + $0x118] sm:$0xff]
    %v106 = vld [vmem:[#allocation3 + $0x120] sm:$0xff]
    %v107 = vld [vmem:[#allocation3 + $0x128] sm:$0xff]
    %v108 = vld [vmem:[#allocation3 + $0x130] sm:$0xff]
    %v109 = vld [vmem:[#allocation3 + $0x138] sm:$0xff]
    %v110 = vld [vmem:[#allocation3 + $0x140] sm:$0xff]
    %v111 = vld [vmem:[#allocation3 + $0x148] sm:$0xff]
    %v112 = vld [vmem:[#allocation3 + $0x150] sm:$0xff]
    %v113 = vld [vmem:[#allocation3 + $0x158] sm:$0xff]
    %v114 = vld [vmem:[#allocation3 + $0x160] sm:$0xff]
    %v115 = vld [vmem:[#allocation3 + $0x168] sm:$0xff]
    %v116 = vld [vmem:[#allocation3 + $0x170] sm:$0xff]
    %v117 = vld [vmem:[#allocation3 + $0x178] sm:$0xff]
    %v118 = vld [vmem:[#allocation3 + $0x180] sm:$0xff]
    %v119 = vld [vmem:[#allocation3 + $0x188] sm:$0xff]
    %v120 = vld [vmem:[#allocation3 + $0x190] sm:$0xff]
    %v121 = vld [vmem:[#allocation3 + $0x198] sm:$0xff]
    %v122 = vld [vmem:[#allocation3 + $0x1a0] sm:$0xff]
    %v123 = vld [vmem:[#allocation3 + $0x1a8] sm:$0xff]
    %v124 = vld [vmem:[#allocation3 + $0x1b0] sm:$0xff]
    %v125 = vld [vmem:[#allocation3 + $0x1b8] sm:$0xff]
    %v126 = vld [vmem:[#allocation3 + $0x1c0] sm:$0xff]
    %v127 = vld [vmem:[#allocation3 + $0x1c8] sm:$0xff]
    %v128 = vld [vmem:[#allocation3 + $0x1d0] sm:$0xff]
    %v129 = vld [vmem:[#allocation3 + $0x1d8] sm:$0xff]
    %v130 = vld [vmem:[#allocation3 + $0x1e0] sm:$0xff]
    %v131 = vld [vmem:[#allocation3 + $0x1e8] sm:$0xff]
    %v132 = vld [vmem:[#allocation3 + $0x1f0] sm:$0xff]
    %v133 = vld [vmem:[#allocation3 + $0x1f8] sm:$0xff]
    %v134 = vld [vmem:[#allocation3 + $0x200] sm:$0xff]
    %v135 = vld [vmem:[#allocation3 + $0x208] sm:$0xff]
    %v136 = vld [vmem:[#allocation3 + $0x210] sm:$0xff]
    %v137 = vld [vmem:[#allocation3 + $0x218] sm:$0xff]
    %v138 = vld [vmem:[#allocation3 + $0x220] sm:$0xff]
    %v139 = vld [vmem:[#allocation3 + $0x228] sm:$0xff]
    %v140 = vld [vmem:[#allocation3 + $0x230] sm:$0xff]
    %v141 = vld [vmem:[#allocation3 + $0x238] sm:$0xff]
    %v142 = vld [vmem:[#allocation3 + $0x240] sm:$0xff]
    %v143 = vld [vmem:[#allocation3 + $0x248] sm:$0xff]
    %v144 = vld [vmem:[#allocation3 + $0x250] sm:$0xff]
    %v145 = vld [vmem:[#allocation3 + $0x258] sm:$0xff]
    %v146 = vld [vmem:[#allocation3 + $0x260] sm:$0xff]
    %v147 = vld [vmem:[#allocation3 + $0x268] sm:$0xff]
    %v148 = vld [vmem:[#allocation3 + $0x270] sm:$0xff]
    %v149 = vld [vmem:[#allocation3 + $0x278] sm:$0xff]
    %v150 = vld [vmem:[#allocation3 + $0x280] sm:$0xff]
    %v151 = vld [vmem:[#allocation3 + $0x288] sm:$0xff]
    %v152 = vld [vmem:[#allocation3 + $0x290] sm:$0xff]
    %v153 = vld [vmem:[#allocation3 + $0x298] sm:$0xff]
    %v154 = vld [vmem:[#allocation3 + $0x2a0] sm:$0xff]
    %v155 = vld [vmem:[#allocation3 + $0x2a8] sm:$0xff]
    %v156 = vld [vmem:[#allocation3 + $0x2b0] sm:$0xff]
    %v157 = vld [vmem:[#allocation3 + $0x2b8] sm:$0xff]
    %v158 = vld [vmem:[#allocation3 + $0x2c0] sm:$0xff]
    %v159 = vld [vmem:[#allocation3 + $0x2c8] sm:$0xff]
    %v160 = vld [vmem:[#allocation3 + $0x2d0] sm:$0xff]
    %v161 = vld [vmem:[#allocation3 + $0x2d8] sm:$0xff]
    %v162 = vld [vmem:[#allocation3 + $0x2e0] sm:$0xff]
    %v163 = vld [vmem:[#allocation3 + $0x2e8] sm:$0xff]
    %v164 = vld [vmem:[#allocation3 + $0x2f0] sm:$0xff]
    %v165 = vld [vmem:[#allocation3 + $0x2f8] sm:$0xff]
    %v172 = vunpack.c.l.b16 %v64
    %v173 = vunpack.c.h.b16 %v64
    %v174 = vunpack.c.l.b16 %v65
    %v175 = vunpack.c.h.b16 %v65
    %v176 = vunpack.c.l.b16 %v66
    %v177 = vunpack.c.h.b16 %v66
    %v178 = vunpack.c.l.b16 %v67
    %v179 = vunpack.c.h.b16 %v67
    %v180 = vunpack.c.l.b16 %v68
    %v181 = vunpack.c.h.b16 %v68
    %v182 = vunpack.c.l.b16 %v69
    %v183 = vunpack.c.h.b16 %v69
    %v184 = vpack.c.b16 %v178, %v172
    %v185 = vpack.c.b16 %v179, %v173
    %v186 = vpack.c.b16 %v180, %v174
    %v187 = vpack.c.b16 %v181, %v175
    %v188 = vpack.c.b16 %v182, %v176
    %v189 = vpack.c.b16 %v183, %v177
    %v292 = vunpack.c.l.b16 %v70
    %v293 = vunpack.c.h.b16 %v70
    %v294 = vunpack.c.l.b16 %v71
    %v295 = vunpack.c.h.b16 %v71
    %v296 = vunpack.c.l.b16 %v72
    %v297 = vunpack.c.h.b16 %v72
    %v298 = vunpack.c.l.b16 %v73
    %v299 = vunpack.c.h.b16 %v73
    %v300 = vunpack.c.l.b16 %v74
    %v301 = vunpack.c.h.b16 %v74
    %v302 = vunpack.c.l.b16 %v75
    %v303 = vunpack.c.h.b16 %v75
    %v304 = vunpack.c.l.b16 %v76
    %v305 = vunpack.c.h.b16 %v76
    %v306 = vunpack.c.l.b16 %v77
    %v307 = vunpack.c.h.b16 %v77
    %v308 = vunpack.c.l.b16 %v78
    %v309 = vunpack.c.h.b16 %v78
    %v310 = vunpack.c.l.b16 %v79
    %v311 = vunpack.c.h.b16 %v79
    %v312 = vunpack.c.l.b16 %v80
    %v313 = vunpack.c.h.b16 %v80
    %v314 = vunpack.c.l.b16 %v81
    %v315 = vunpack.c.h.b16 %v81
    %v316 = vunpack.c.l.b16 %v82
    %v317 = vunpack.c.h.b16 %v82
    %v318 = vunpack.c.l.b16 %v83
    %v319 = vunpack.c.h.b16 %v83
    %v320 = vunpack.c.l.b16 %v84
    %v321 = vunpack.c.h.b16 %v84
    %v322 = vunpack.c.l.b16 %v85
    %v323 = vunpack.c.h.b16 %v85
    %v324 = vunpack.c.l.b16 %v86
    %v325 = vunpack.c.h.b16 %v86
    %v326 = vunpack.c.l.b16 %v87
    %v327 = vunpack.c.h.b16 %v87
    %v328 = vunpack.c.l.b16 %v88
    %v329 = vunpack.c.h.b16 %v88
    %v330 = vunpack.c.l.b16 %v89
    %v331 = vunpack.c.h.b16 %v89
    %v332 = vunpack.c.l.b16 %v90
    %v333 = vunpack.c.h.b16 %v90
    %v334 = vunpack.c.l.b16 %v91
    %v335 = vunpack.c.h.b16 %v91
    %v336 = vunpack.c.l.b16 %v92
    %v337 = vunpack.c.h.b16 %v92
    %v338 = vunpack.c.l.b16 %v93
    %v339 = vunpack.c.h.b16 %v93
    %v340 = vunpack.c.l.b16 %v94
    %v341 = vunpack.c.h.b16 %v94
    %v342 = vunpack.c.l.b16 %v95
    %v343 = vunpack.c.h.b16 %v95
    %v344 = vunpack.c.l.b16 %v96
    %v345 = vunpack.c.h.b16 %v96
    %v346 = vunpack.c.l.b16 %v97
    %v347 = vunpack.c.h.b16 %v97
    %v348 = vunpack.c.l.b16 %v98
    %v349 = vunpack.c.h.b16 %v98
    %v350 = vunpack.c.l.b16 %v99
    %v351 = vunpack.c.h.b16 %v99
    %v352 = vunpack.c.l.b16 %v100
    %v353 = vunpack.c.h.b16 %v100
    %v354 = vunpack.c.l.b16 %v101
    %v355 = vunpack.c.h.b16 %v101
    %v356 = vunpack.c.l.b16 %v102
    %v357 = vunpack.c.h.b16 %v102
    %v358 = vunpack.c.l.b16 %v103
    %v359 = vunpack.c.h.b16 %v103
    %v360 = vunpack.c.l.b16 %v104
    %v361 = vunpack.c.h.b16 %v104
    %v362 = vunpack.c.l.b16 %v105
    %v363 = vunpack.c.h.b16 %v105
    %v364 = vunpack.c.l.b16 %v106
    %v365 = vunpack.c.h.b16 %v106
    %v366 = vunpack.c.l.b16 %v107
    %v367 = vunpack.c.h.b16 %v107
    %v368 = vunpack.c.l.b16 %v108
    %v369 = vunpack.c.h.b16 %v108
    %v370 = vunpack.c.l.b16 %v109
    %v371 = vunpack.c.h.b16 %v109
    %v372 = vunpack.c.l.b16 %v110
    %v373 = vunpack.c.h.b16 %v110
    %v374 = vunpack.c.l.b16 %v111
    %v375 = vunpack.c.h.b16 %v111
    %v376 = vunpack.c.l.b16 %v112
    %v377 = vunpack.c.h.b16 %v112
    %v378 = vunpack.c.l.b16 %v113
    %v379 = vunpack.c.h.b16 %v113
    %v380 = vunpack.c.l.b16 %v114
    %v381 = vunpack.c.h.b16 %v114
    %v382 = vunpack.c.l.b16 %v115
    %v383 = vunpack.c.h.b16 %v115
    %v384 = vunpack.c.l.b16 %v116
    %v385 = vunpack.c.h.b16 %v116
    %v386 = vunpack.c.l.b16 %v117
    %v387 = vunpack.c.h.b16 %v117
    %v388 = vunpack.c.l.b16 %v118
    %v389 = vunpack.c.h.b16 %v118
    %v390 = vunpack.c.l.b16 %v119
    %v391 = vunpack.c.h.b16 %v119
    %v392 = vunpack.c.l.b16 %v120
    %v393 = vunpack.c.h.b16 %v120
    %v394 = vunpack.c.l.b16 %v121
    %v395 = vunpack.c.h.b16 %v121
    %v396 = vunpack.c.l.b16 %v122
    %v397 = vunpack.c.h.b16 %v122
    %v398 = vunpack.c.l.b16 %v123
    %v399 = vunpack.c.h.b16 %v123
    %v400 = vunpack.c.l.b16 %v124
    %v401 = vunpack.c.h.b16 %v124
    %v402 = vunpack.c.l.b16 %v125
    %v403 = vunpack.c.h.b16 %v125
    %v404 = vunpack.c.l.b16 %v126
    %v405 = vunpack.c.h.b16 %v126
    %v406 = vunpack.c.l.b16 %v127
    %v407 = vunpack.c.h.b16 %v127
    %v408 = vunpack.c.l.b16 %v128
    %v409 = vunpack.c.h.b16 %v128
    %v410 = vunpack.c.l.b16 %v129
    %v411 = vunpack.c.h.b16 %v129
    %v412 = vunpack.c.l.b16 %v130
    %v413 = vunpack.c.h.b16 %v130
    %v414 = vunpack.c.l.b16 %v131
    %v415 = vunpack.c.h.b16 %v131
    %v416 = vunpack.c.l.b16 %v132
    %v417 = vunpack.c.h.b16 %v132
    %v418 = vunpack.c.l.b16 %v133
    %v419 = vunpack.c.h.b16 %v133
    %v420 = vunpack.c.l.b16 %v134
    %v421 = vunpack.c.h.b16 %v134
    %v422 = vunpack.c.l.b16 %v135
    %v423 = vunpack.c.h.b16 %v135
    %v424 = vunpack.c.l.b16 %v136
    %v425 = vunpack.c.h.b16 %v136
    %v426 = vunpack.c.l.b16 %v137
    %v427 = vunpack.c.h.b16 %v137
    %v428 = vunpack.c.l.b16 %v138
    %v429 = vunpack.c.h.b16 %v138
    %v430 = vunpack.c.l.b16 %v139
    %v431 = vunpack.c.h.b16 %v139
    %v432 = vunpack.c.l.b16 %v140
    %v433 = vunpack.c.h.b16 %v140
    %v434 = vunpack.c.l.b16 %v141
    %v435 = vunpack.c.h.b16 %v141
    %v436 = vunpack.c.l.b16 %v142
    %v437 = vunpack.c.h.b16 %v142
    %v438 = vunpack.c.l.b16 %v143
    %v439 = vunpack.c.h.b16 %v143
    %v440 = vunpack.c.l.b16 %v144
    %v441 = vunpack.c.h.b16 %v144
    %v442 = vunpack.c.l.b16 %v145
    %v443 = vunpack.c.h.b16 %v145
    %v444 = vunpack.c.l.b16 %v146
    %v445 = vunpack.c.h.b16 %v146
    %v446 = vunpack.c.l.b16 %v147
    %v447 = vunpack.c.h.b16 %v147
    %v448 = vunpack.c.l.b16 %v148
    %v449 = vunpack.c.h.b16 %v148
    %v450 = vunpack.c.l.b16 %v149
    %v451 = vunpack.c.h.b16 %v149
    %v452 = vunpack.c.l.b16 %v150
    %v453 = vunpack.c.h.b16 %v150
    %v454 = vunpack.c.l.b16 %v151
    %v455 = vunpack.c.h.b16 %v151
    %v456 = vunpack.c.l.b16 %v152
    %v457 = vunpack.c.h.b16 %v152
    %v458 = vunpack.c.l.b16 %v153
    %v459 = vunpack.c.h.b16 %v153
    %v460 = vunpack.c.l.b16 %v154
    %v461 = vunpack.c.h.b16 %v154
    %v462 = vunpack.c.l.b16 %v155
    %v463 = vunpack.c.h.b16 %v155
    %v464 = vunpack.c.l.b16 %v156
    %v465 = vunpack.c.h.b16 %v156
    %v466 = vunpack.c.l.b16 %v157
    %v467 = vunpack.c.h.b16 %v157
    %v468 = vunpack.c.l.b16 %v158
    %v469 = vunpack.c.h.b16 %v158
    %v470 = vunpack.c.l.b16 %v159
    %v471 = vunpack.c.h.b16 %v159
    %v472 = vunpack.c.l.b16 %v160
    %v473 = vunpack.c.h.b16 %v160
    %v474 = vunpack.c.l.b16 %v161
    %v475 = vunpack.c.h.b16 %v161
    %v476 = vunpack.c.l.b16 %v162
    %v477 = vunpack.c.h.b16 %v162
    %v478 = vunpack.c.l.b16 %v163
    %v479 = vunpack.c.h.b16 %v163
    %v480 = vunpack.c.l.b16 %v164
    %v481 = vunpack.c.h.b16 %v164
    %v482 = vunpack.c.l.b16 %v165
    %v483 = vunpack.c.h.b16 %v165
    %v484 = vpack.c.b16 %v294, %v292
    %v485 = vpack.c.b16 %v295, %v293
    %v486 = vpack.c.b16 %v298, %v296
    %v487 = vpack.c.b16 %v299, %v297
    %v488 = vpack.c.b16 %v302, %v300
    %v489 = vpack.c.b16 %v303, %v301
    %v490 = vpack.c.b16 %v306, %v304
    %v491 = vpack.c.b16 %v307, %v305
    %v492 = vpack.c.b16 %v310, %v308
    %v493 = vpack.c.b16 %v311, %v309
    %v494 = vpack.c.b16 %v314, %v312
    %v495 = vpack.c.b16 %v315, %v313
    %v496 = vpack.c.b16 %v318, %v316
    %v497 = vpack.c.b16 %v319, %v317
    %v498 = vpack.c.b16 %v322, %v320
    %v499 = vpack.c.b16 %v323, %v321
    %v500 = vpack.c.b16 %v326, %v324
    %v501 = vpack.c.b16 %v327, %v325
    %v502 = vpack.c.b16 %v330, %v328
    %v503 = vpack.c.b16 %v331, %v329
    %v504 = vpack.c.b16 %v334, %v332
    %v505 = vpack.c.b16 %v335, %v333
    %v506 = vpack.c.b16 %v338, %v336
    %v507 = vpack.c.b16 %v339, %v337
    %v508 = vpack.c.b16 %v342, %v340
    %v509 = vpack.c.b16 %v343, %v341
    %v510 = vpack.c.b16 %v346, %v344
    %v511 = vpack.c.b16 %v347, %v345
    %v512 = vpack.c.b16 %v350, %v348
    %v513 = vpack.c.b16 %v351, %v349
    %v514 = vpack.c.b16 %v354, %v352
    %v515 = vpack.c.b16 %v355, %v353
    %v516 = vpack.c.b16 %v358, %v356
    %v517 = vpack.c.b16 %v359, %v357
    %v518 = vpack.c.b16 %v362, %v360
    %v519 = vpack.c.b16 %v363, %v361
    %v520 = vpack.c.b16 %v366, %v364
    %v521 = vpack.c.b16 %v367, %v365
    %v522 = vpack.c.b16 %v370, %v368
    %v523 = vpack.c.b16 %v371, %v369
    %v524 = vpack.c.b16 %v374, %v372
    %v525 = vpack.c.b16 %v375, %v373
    %v526 = vpack.c.b16 %v378, %v376
    %v527 = vpack.c.b16 %v379, %v377
    %v528 = vpack.c.b16 %v382, %v380
    %v529 = vpack.c.b16 %v383, %v381
    %v530 = vpack.c.b16 %v386, %v384
    %v531 = vpack.c.b16 %v387, %v385
    %v532 = vpack.c.b16 %v390, %v388
    %v533 = vpack.c.b16 %v391, %v389
    %v534 = vpack.c.b16 %v394, %v392
    %v535 = vpack.c.b16 %v395, %v393
    %v536 = vpack.c.b16 %v398, %v396
    %v537 = vpack.c.b16 %v399, %v397
    %v538 = vpack.c.b16 %v402, %v400
    %v539 = vpack.c.b16 %v403, %v401
    %v540 = vpack.c.b16 %v406, %v404
    %v541 = vpack.c.b16 %v407, %v405
    %v542 = vpack.c.b16 %v410, %v408
    %v543 = vpack.c.b16 %v411, %v409
    %v544 = vpack.c.b16 %v414, %v412
    %v545 = vpack.c.b16 %v415, %v413
    %v546 = vpack.c.b16 %v418, %v416
    %v547 = vpack.c.b16 %v419, %v417
    %v548 = vpack.c.b16 %v422, %v420
    %v549 = vpack.c.b16 %v423, %v421
    %v550 = vpack.c.b16 %v426, %v424
    %v551 = vpack.c.b16 %v427, %v425
    %v552 = vpack.c.b16 %v430, %v428
    %v553 = vpack.c.b16 %v431, %v429
    %v554 = vpack.c.b16 %v434, %v432
    %v555 = vpack.c.b16 %v435, %v433
    %v556 = vpack.c.b16 %v438, %v436
    %v557 = vpack.c.b16 %v439, %v437
    %v558 = vpack.c.b16 %v442, %v440
    %v559 = vpack.c.b16 %v443, %v441
    %v560 = vpack.c.b16 %v446, %v444
    %v561 = vpack.c.b16 %v447, %v445
    %v562 = vpack.c.b16 %v450, %v448
    %v563 = vpack.c.b16 %v451, %v449
    %v564 = vpack.c.b16 %v454, %v452
    %v565 = vpack.c.b16 %v455, %v453
    %v566 = vpack.c.b16 %v458, %v456
    %v567 = vpack.c.b16 %v459, %v457
    %v568 = vpack.c.b16 %v462, %v460
    %v569 = vpack.c.b16 %v463, %v461
    %v570 = vpack.c.b16 %v466, %v464
    %v571 = vpack.c.b16 %v467, %v465
    %v572 = vpack.c.b16 %v470, %v468
    %v573 = vpack.c.b16 %v471, %v469
    %v574 = vpack.c.b16 %v474, %v472
    %v575 = vpack.c.b16 %v475, %v473
    %v576 = vpack.c.b16 %v478, %v476
    %v577 = vpack.c.b16 %v479, %v477
    %v578 = vpack.c.b16 %v482, %v480
    %v579 = vpack.c.b16 %v483, %v481
    %676 = vmatprep.subr.bf16.mxu0 %v499
    %677 = vmatpush1.bf16.msra.mxu0 %v498
    %678 = vmatprep.subr.bf16.mxu0 %v497
    %679 = vmatpush1.bf16.msra.mxu0 %v496
    %680 = vmatprep.subr.bf16.mxu0 %v495
    %681 = vmatpush1.bf16.msra.mxu0 %v494
    %682 = vmatprep.subr.bf16.mxu0 %v493
    %683 = vmatpush1.bf16.msra.mxu0 %v492
    %684 = vmatprep.subr.bf16.mxu0 %v491
    %685 = vmatpush1.bf16.msra.mxu0 %v490
    %686 = vmatprep.subr.bf16.mxu0 %v489
    %687 = vmatpush1.bf16.msra.mxu0 %v488
    %688 = vmatprep.subr.bf16.mxu0 %v487
    %689 = vmatpush1.bf16.msra.mxu0 %v486
    %690 = vmatprep.subr.bf16.mxu0 %v485
    %691 = vmatpush1.bf16.msra.mxu0 %v484
    %692 = vmatprep.subr.bf16.mxu0 %v515
    %693 = vmatpush2.bf16.msra.mxu0 %v514
    %694 = vmatprep.subr.bf16.mxu0 %v513
    %695 = vmatpush2.bf16.msra.mxu0 %v512
    %696 = vmatprep.subr.bf16.mxu0 %v511
    %697 = vmatpush2.bf16.msra.mxu0 %v510
    %698 = vmatprep.subr.bf16.mxu0 %v509
    %699 = vmatpush2.bf16.msra.mxu0 %v508
    %700 = vmatprep.subr.bf16.mxu0 %v507
    %701 = vmatpush2.bf16.msra.mxu0 %v506
    %702 = vmatprep.subr.bf16.mxu0 %v505
    %703 = vmatpush2.bf16.msra.mxu0 %v504
    %704 = vmatprep.subr.bf16.mxu0 %v503
    %705 = vmatpush2.bf16.msra.mxu0 %v502
    %706 = vmatprep.subr.bf16.mxu0 %v501
    %707 = vmatpush2.bf16.msra.mxu0 %v500
    %708 = vmatprep.mubr.bf16.mxu0 %v185
    %709 = vmatmul.mubr.bf16.gmra.mxu0 %v184
    %v710 = vpop.f32.mrf.mxu0
    %v711 = vadd.f32 0.0, %v710
    %v712 = vpop.f32.mrf.mxu0
    %v713 = vadd.f32 0.0, %v712
    %v714 = vpop.f32.mrf.mxu0
    %v715 = vadd.f32 0.0, %v714
    %v716 = vpop.f32.mrf.mxu0
    %v717 = vadd.f32 0.0, %v716
    %718 = vdwg.mxu0
    %719 = vmatprep.subr.bf16.mxu0 %v531
    %720 = vmatpush1.bf16.msra.mxu0 %v530
    %721 = vmatprep.subr.bf16.mxu0 %v529
    %722 = vmatpush1.bf16.msra.mxu0 %v528
    %723 = vmatprep.subr.bf16.mxu0 %v527
    %724 = vmatpush1.bf16.msra.mxu0 %v526
    %725 = vmatprep.subr.bf16.mxu0 %v525
    %726 = vmatpush1.bf16.msra.mxu0 %v524
    %727 = vmatprep.subr.bf16.mxu0 %v523
    %728 = vmatpush1.bf16.msra.mxu0 %v522
    %729 = vmatprep.subr.bf16.mxu0 %v521
    %730 = vmatpush1.bf16.msra.mxu0 %v520
    %731 = vmatprep.subr.bf16.mxu0 %v519
    %732 = vmatpush1.bf16.msra.mxu0 %v518
    %733 = vmatprep.subr.bf16.mxu0 %v517
    %734 = vmatpush1.bf16.msra.mxu0 %v516
    %735 = vmatprep.subr.bf16.mxu0 %v547
    %736 = vmatpush2.bf16.msra.mxu0 %v546
    %737 = vmatprep.subr.bf16.mxu0 %v545
    %738 = vmatpush2.bf16.msra.mxu0 %v544
    %739 = vmatprep.subr.bf16.mxu0 %v543
    %740 = vmatpush2.bf16.msra.mxu0 %v542
    %741 = vmatprep.subr.bf16.mxu0 %v541
    %742 = vmatpush2.bf16.msra.mxu0 %v540
    %743 = vmatprep.subr.bf16.mxu0 %v539
    %744 = vmatpush2.bf16.msra.mxu0 %v538
    %745 = vmatprep.subr.bf16.mxu0 %v537
    %746 = vmatpush2.bf16.msra.mxu0 %v536
    %747 = vmatprep.subr.bf16.mxu0 %v535
    %748 = vmatpush2.bf16.msra.mxu0 %v534
    %749 = vmatprep.subr.bf16.mxu0 %v533
    %750 = vmatpush2.bf16.msra.mxu0 %v532
    %751 = vmatprep.mubr.bf16.mxu0 %v187
    %752 = vmatmul.mubr.bf16.gmra.mxu0 %v186
    %v753 = vpop.f32.mrf.mxu0
    %v754 = vadd.f32 %v711, %v753
    %v755 = vpop.f32.mrf.mxu0
    %v756 = vadd.f32 %v713, %v755
    %v757 = vpop.f32.mrf.mxu0
    %v758 = vadd.f32 %v715, %v757
    %v759 = vpop.f32.mrf.mxu0
    %v760 = vadd.f32 %v717, %v759
    %761 = vdwg.mxu0
    %762 = vmatprep.subr.bf16.mxu0 %v563
    %763 = vmatpush1.bf16.msra.mxu0 %v562
    %764 = vmatprep.subr.bf16.mxu0 %v561
    %765 = vmatpush1.bf16.msra.mxu0 %v560
    %766 = vmatprep.subr.bf16.mxu0 %v559
    %767 = vmatpush1.bf16.msra.mxu0 %v558
    %768 = vmatprep.subr.bf16.mxu0 %v557
    %769 = vmatpush1.bf16.msra.mxu0 %v556
    %770 = vmatprep.subr.bf16.mxu0 %v555
    %771 = vmatpush1.bf16.msra.mxu0 %v554
    %772 = vmatprep.subr.bf16.mxu0 %v553
    %773 = vmatpush1.bf16.msra.mxu0 %v552
    %774 = vmatprep.subr.bf16.mxu0 %v551
    %775 = vmatpush1.bf16.msra.mxu0 %v550
    %776 = vmatprep.subr.bf16.mxu0 %v549
    %777 = vmatpush1.bf16.msra.mxu0 %v548
    %778 = vmatprep.subr.bf16.mxu0 %v579
    %779 = vmatpush2.bf16.msra.mxu0 %v578
    %780 = vmatprep.subr.bf16.mxu0 %v577
    %781 = vmatpush2.bf16.msra.mxu0 %v576
    %782 = vmatprep.subr.bf16.mxu0 %v575
    %783 = vmatpush2.bf16.msra.mxu0 %v574
    %784 = vmatprep.subr.bf16.mxu0 %v573
    %785 = vmatpush2.bf16.msra.mxu0 %v572
    %786 = vmatprep.subr.bf16.mxu0 %v571
    %787 = vmatpush2.bf16.msra.mxu0 %v570
    %788 = vmatprep.subr.bf16.mxu0 %v569
    %789 = vmatpush2.bf16.msra.mxu0 %v568
    %790 = vmatprep.subr.bf16.mxu0 %v567
    %791 = vmatpush2.bf16.msra.mxu0 %v566
    %792 = vmatprep.subr.bf16.mxu0 %v565
    %793 = vmatpush2.bf16.msra.mxu0 %v564
    %794 = vmatprep.mubr.bf16.mxu0 %v189
    %795 = vmatmul.mubr.bf16.gmra.mxu0 %v188
    %v796 = vpop.f32.mrf.mxu0
    %v797 = vadd.f32 %v754, %v796
    %v798 = vpop.f32.mrf.mxu0
    %v799 = vadd.f32 %v756, %v798
    %v800 = vpop.f32.mrf.mxu0
    %v801 = vadd.f32 %v758, %v800
    %v802 = vpop.f32.mrf.mxu0
    %v803 = vadd.f32 %v760, %v802
    %804 = vdwg.mxu0
    %v805 = vadd.f32 %v60, %v797
    %v806 = vadd.f32 %v61, %v799
    %v807 = vadd.f32 %v62, %v801
    %v808 = vadd.f32 %v63, %v803
    %809 = vst [vmem:[#allocation2] sm:$0xff] %v805
    %810 = vst [vmem:[#allocation2 + $0x8] sm:$0xff] %v806
    %811 = vst [vmem:[#allocation2 + $0x10] sm:$0xff] %v807
    %812 = vst [vmem:[#allocation2 + $0x18] sm:$0xff] %v808
    // Predicated region
    $region26: #{imagenet_narrow_mlp_forward.3} parent=1 // pred_check
      %p813 = pneg %p40
    $region27: #{imagenet_narrow_mlp_forward.3} parent=1 // pred_check_branch
      %815 = sbr.rel (%p813) target = $region29
    $region28: #{imagenet_narrow_mlp_forward.3} parent=1 // pred_region
      %v816 = vld [vmem:[#allocation2] sm:$0xff]
      %v817 = vld [vmem:[#allocation2 + $0x8] sm:$0xff]
      %v818 = vld [vmem:[#allocation2 + $0x10] sm:$0xff]
      %v819 = vld [vmem:[#allocation2 + $0x18] sm:$0xff]
      %v820 = vmax.f32 %v816, 0.0
      %v821 = vmax.f32 %v817, 0.0
      %v822 = vmax.f32 %v818, 0.0
      %v823 = vmax.f32 %v819, 0.0
      %v824 = vpack.c.bf16 %v822, %v820
      %v825 = vpack.c.bf16 %v823, %v821
      %v828 = vunpack.c.l.b16 %v824
      %v829 = vunpack.c.l.b16 %v825
      %v830 = vunpack.c.h.b16 %v824
      %v831 = vunpack.c.h.b16 %v825
      %v832 = vpack.c.b16 %v829, %v828
      %v833 = vpack.c.b16 %v831, %v830
      %836 = vst [vmem:[%s3] sm:$0xff] %v832
      %837 = vst [vmem:[%s3 + $0x8] sm:$0xff] %v833
    $region29: #{imagenet_narrow_mlp_forward.3} parent=1 // pred_fallthru
      _
    // Predicated region
    $region30: #{imagenet_narrow_mlp_forward.3} parent=1 // pred_check
      _
    $region31: #{imagenet_narrow_mlp_forward.3} parent=1 // pred_check_branch
      %839 = sbr.rel (0) target = $region33
    $region32: #{imagenet_narrow_mlp_forward.3} parent=1 // pred_region
      _
    $region33: #{imagenet_narrow_mlp_forward.3} parent=1 // pred_fallthru
      _
    // Predicated region
    $region34: #{imagenet_narrow_mlp_forward.3} parent=1 // pred_check
      _
    $region35: #{imagenet_narrow_mlp_forward.3} parent=1 // pred_check_branch
      %841 = sbr.rel (0) target = $region37
    $region36: #{imagenet_narrow_mlp_forward.3} parent=1 // pred_region
      _
    $region37: #{imagenet_narrow_mlp_forward.3} parent=1 // pred_fallthru
      _
    %842 = vsyncpa [#allocation4], 1
    %843 = vsyncpa [#allocation6], 1

</llo_original>
